<compile_context>
chip_gen: v7x
topology: tpu7x:2x2x1
jax: 0.10.0
libtpu: 0.0.40
codegen_flags: <defaults>
</compile_context>

<pallas_src>
import functools

import jax
import jax.numpy as jnp
from jax import lax
from jax.experimental import pallas as pl
from jax.experimental.pallas import tpu as pltpu


def _sepconv_kernel(dw_w_ref, dw_b_ref, pw_w_ref, pw_b_ref,   # SMEM scalar tables
                    x_ref, x_top_ref, x_bot_ref,               # VMEM input tiles
                    o_ref,                                     # VMEM output tile
                    *, TH, W, Cin, Cout, NH, HB, RS):
    """One (batch, row-tile) step of depthwise 3x3 + pointwise 1x1.

    dw_w_ref : (9, Cin)   SMEM   depthwise taps (row-major kh*3+kw)
    dw_b_ref : (Cin,)     SMEM   depthwise bias
    pw_w_ref : (Cin, Cout) SMEM  pointwise weights
    pw_b_ref : (Cout,)    SMEM   pointwise bias
    x_ref    : (1, Cin, TH, W)   current row tile
    x_top_ref: (1, Cin, HB, W)   8-row block holding the halo row above (clamped)
    x_bot_ref: (1, Cin, HB, W)   8-row block holding the halo row below (clamped)
    o_ref    : (1, Cout, TH, W)
    """
    h = pl.program_id(1)
    has_top = h > 0           # a real row exists above this tile (else zero pad)
    has_bot = h < NH - 1      # a real row exists below this tile (else zero pad)

    f32 = jnp.float32
    nsub = TH // RS

    # Halo rows (masked to zero at the true image border), hoisted out of the
    # per-channel / per-sub-tile loops.  Each entry is a (W,) f32 value.
    top_rows = [jnp.where(has_top, x_top_ref[0, c, HB - 1, :].astype(f32), 0.0)
                for c in range(Cin)]
    bot_rows = [jnp.where(has_bot, x_bot_ref[0, c, 0, :].astype(f32), 0.0)
                for c in range(Cin)]

    lane_aligned = (W % 128 == 0)
    if lane_aligned:
        # Edge masks hoisted once (JAX does not CSE broadcast_in_dim).
        col = lax.broadcasted_iota(jnp.int32, (RS, W), 1)
        first_col = col == 0
        last_col = col == W - 1
        zcol = None
    else:
        zcol = jnp.zeros((RS, 1), dtype=f32)

    def tap_left(src):
        # result[:, w] = src[:, w-1]; column 0 = 0  (padding=1, kw=0 tap)
        if lane_aligned:
            return jnp.where(first_col, 0.0, pltpu.roll(src, shift=1, axis=1))
        return jnp.concatenate([zcol, src[:, :W - 1]], axis=1)

    def tap_right(src):
        # result[:, w] = src[:, w+1]; column W-1 = 0  (padding=1, kw=2 tap)
        if lane_aligned:
            return jnp.where(last_col, 0.0, pltpu.roll(src, shift=-1, axis=1))
        return jnp.concatenate([src[:, 1:], zcol], axis=1)

    for s in range(nsub):
        r0 = s * RS
        # Register (vreg) accumulators for this sub-tile, seeded with the
        # pointwise bias — no VMEM scratch round trips.
        acc = [jnp.full((RS, W), pw_b_ref[co], dtype=f32) for co in range(Cout)]

        for c in range(Cin):
            mid = x_ref[0, c, r0:r0 + RS, :].astype(f32)            # (RS, W)
            above = (top_rows[c] if s == 0
                     else x_ref[0, c, r0 - 1, :].astype(f32))        # (W,)
            below = (bot_rows[c] if s == nsub - 1
                     else x_ref[0, c, r0 + RS, :].astype(f32))       # (W,)

            # Vertical neighbours: x_dn[r] = input row r-1, x_up[r] = row r+1.
            x_dn = jnp.concatenate([above[None, :], mid[:RS - 1, :]], axis=0)
            x_up = jnp.concatenate([mid[1:, :], below[None, :]], axis=0)

            # Depthwise 3x3: 9 VPU MACs with SMEM scalar weights.
            d = jnp.full((RS, W), dw_b_ref[c], dtype=f32)
            for kh, src in enumerate((x_dn, mid, x_up)):
                d = d + tap_left(src) * dw_w_ref[kh * 3 + 0, c]
                d = d + src * dw_w_ref[kh * 3 + 1, c]
                d = d + tap_right(src) * dw_w_ref[kh * 3 + 2, c]

            # Pointwise 1x1: broadcast-MAC into register accumulators.
            for co in range(Cout):
                acc[co] = acc[co] + d * pw_w_ref[c, co]

        # Single aligned store per (output channel, sub-tile).
        for co in range(Cout):
            o_ref[0, co, r0:r0 + RS, :] = acc[co].astype(o_ref.dtype)


def _pick_row_tile(N, Cin, Cout, H, W, vmem_budget, HB=8):
    """Largest row tile (multiple of 8, dividing H) with ~2 MiB input per step,
    a double-buffered footprint under the VMEM budget, and >=2 grid steps when
    N == 1 (v7x megacore)."""
    target_in = 2 << 20
    best = HB
    for cand in range(HB, H + 1, HB):
        if H % cand:
            continue
        bytes_in = Cin * cand * W * 4
        bytes_out = Cout * cand * W * 4
        bytes_halo = 2 * Cin * HB * W * 4
        if 2 * (bytes_in + bytes_out + bytes_halo) > vmem_budget:
            continue
        if N == 1 and H > HB and cand > H // 2:
            continue                      # keep >= 2 grid steps for megacore
        if bytes_in <= target_in:
            best = cand
    return best


def separable_conv2d(x, dw_w, dw_b, pw_w, pw_b, *, kernel_size=3, row_tile=None):
    """x: (N, Cin, H, W) f32; dw_w: (K, K, Cin); dw_b: (Cin,); pw_w: (Cin, Cout);
    pw_b: (Cout,).  Returns (N, Cout, H, W)."""
    N, Cin, H, W = x.shape
    KH = KW = kernel_size
    assert kernel_size == 3, "module uses padding=1 ('same' only for kernel_size=3)"
    assert H % 8 == 0, "H must be a multiple of 8 (sublane tiling)"
    Cout = pw_w.shape[1]

    HB = 8   # halo-fetch granularity: one sublane tile of rows
    RS = 8   # sub-tile rows whose Cout accumulators live in vregs

    # Per-generation VMEM budget (v7x has 64 MiB vs 128 MiB on v5e/v6e).
    try:
        info = pltpu.get_tpu_info()
        vmem_cap = int(getattr(info, "vmem_capacity_bytes", 64 << 20))
    except Exception:  # pragma: no cover - conservative fallback off-TPU
        vmem_cap = 64 << 20
    vmem_budget = int(vmem_cap * 0.75)

    if row_tile is None:
        row_tile = _pick_row_tile(N, Cin, Cout, H, W, vmem_budget, HB)
    TH = row_tile
    assert TH % 8 == 0 and H % TH == 0
    NH = H // TH
    thb = TH // HB
    nhb = H // HB

    # VMEM needed by the double-buffered pipeline for this tiling.
    bytes_in = Cin * TH * W * 4
    bytes_out = Cout * TH * W * 4
    bytes_halo = 2 * Cin * HB * W * 4
    needed = 2 * (bytes_in + bytes_out + bytes_halo) + (2 << 20)
    vmem_limit = int(min(max(needed, 16 << 20), vmem_budget))

    kernel = functools.partial(_sepconv_kernel, TH=TH, W=W, Cin=Cin, Cout=Cout,
                               NH=NH, HB=HB, RS=RS)

    # Tiny weight tensors -> SMEM scalar tables via scalar prefetch.
    dw_w2 = dw_w.reshape(KH * KW, Cin)
    dw_b1 = dw_b.reshape(Cin)
    pw_b1 = pw_b.reshape(Cout)

    # TODO(synk): bf16 I/O (f32 accumulate in-kernel) would halve HBM traffic on
    # v5e/v6e if the surrounding model tolerates it; kept f32 to match module.
    out = pl.pallas_call(
        kernel,
        out_shape=jax.ShapeDtypeStruct((N, Cout, H, W), x.dtype),
        grid_spec=pltpu.PrefetchScalarGridSpec(
            num_scalar_prefetch=4,            # dw_w2, dw_b, pw_w, pw_b -> SMEM
            grid=(N, NH),
            in_specs=[
                # main row tile
                pl.BlockSpec((1, Cin, TH, W),
                             lambda n, h, *_: (n, 0, h, 0)),
                # 8-row block containing the single halo row just above (clamped)
                pl.BlockSpec((1, Cin, HB, W),
                             lambda n, h, *_: (n, 0, jnp.maximum(h * thb - 1, 0), 0)),
                # 8-row block containing the single halo row just below (clamped)
                pl.BlockSpec((1, Cin, HB, W),
                             lambda n, h, *_: (n, 0, jnp.minimum((h + 1) * thb,
                                                                 nhb - 1), 0)),
            ],
            out_specs=pl.BlockSpec((1, Cout, TH, W),
                                   lambda n, h, *_: (n, 0, h, 0)),
        ),
        compiler_params=pltpu.CompilerParams(
            dimension_semantics=("parallel", "parallel"),
            vmem_limit_bytes=vmem_limit),
    )(dw_w2, dw_b1, pw_w, pw_b1, x, x, x)
    return out


def _reference(x_nchw, dw_w, dw_b, pw_w, pw_b):
    """Pure-JAX reference matching PyTorch semantics (NCHW, groups=Cin)."""
    N, Cin, H, W = x_nchw.shape
    Cout = pw_w.shape[1]
    dw_w_t = jnp.transpose(dw_w, (2, 0, 1))[:, None, :, :]      # (Cin,1,KH,KW)
    dw = lax.conv_general_dilated(
        x_nchw, dw_w_t, window_strides=(1, 1), padding=((1, 1), (1, 1)),
        dimension_numbers=("NCHW", "OIHW", "NCHW"),
        feature_group_count=Cin)
    dw = dw + dw_b.reshape(1, Cin, 1, 1)
    pw_w_t = jnp.transpose(pw_w, (1, 0))[:, :, None, None]      # (Cout,Cin,1,1)
    out = lax.conv_general_dilated(
        dw, pw_w_t, window_strides=(1, 1), padding=((0, 0), (0, 0)),
        dimension_numbers=("NCHW", "OIHW", "NCHW"))
    return out + pw_b.reshape(1, Cout, 1, 1)


if __name__ == "__main__":
    N, Cin, Cout, H, W, K = 2, 4, 8, 16, 16, 3

    key = jax.random.PRNGKey(0)
    k_x, k_dw, k_db, k_pw, k_pb = jax.random.split(key, 5)

    x = jax.random.normal(k_x, (N, Cin, H, W), dtype=jnp.float32)
    dw_w = jax.random.normal(k_dw, (K, K, Cin), dtype=jnp.float32) * 0.1
    dw_b = jax.random.normal(k_db, (Cin,), dtype=jnp.float32) * 0.1
    pw_w = jax.random.normal(k_pw, (Cin, Cout), dtype=jnp.float32) * 0.1
    pw_b = jax.random.normal(k_pb, (Cout,), dtype=jnp.float32) * 0.1

    ref = _reference(x, dw_w, dw_b, pw_w, pw_b)

    # row_tile=8 -> 2 row tiles per image: exercises the halo / edge-masking path.
    out1 = jax.block_until_ready(
        separable_conv2d(x, dw_w, dw_b, pw_w, pw_b, kernel_size=K, row_tile=8))
    assert out1.shape == (N, Cout, H, W)
    assert jnp.allclose(out1, ref, atol=1e-4, rtol=1e-4)

    # Auto-picked tile (single row tile per image at this H): exercises the
    # interior sub-tile row reads and the fully zero-padded top/bottom path.
    out2 = jax.block_until_ready(
        separable_conv2d(x, dw_w, dw_b, pw_w, pw_b, kernel_size=K))
    assert jnp.allclose(out2, ref, atol=1e-4, rtol=1e-4)

    print("KERNEL_OK")
</pallas_src>

<mosaic_0001>
module attributes {stable_mosaic.version = 11 : i64} {
  func.func @_sepconv_kernel(%arg0: i32, %arg1: i32, %arg2: memref<9x4xf32, #tpu.memory_space<smem>>, %arg3: memref<4xf32, #tpu.memory_space<smem>>, %arg4: memref<4x8xf32, #tpu.memory_space<smem>>, %arg5: memref<8xf32, #tpu.memory_space<smem>>, %arg6: memref<1x4x8x16xf32, #tpu.memory_space<vmem>>, %arg7: memref<1x4x8x16xf32, #tpu.memory_space<vmem>>, %arg8: memref<1x4x8x16xf32, #tpu.memory_space<vmem>>, %arg9: memref<1x8x8x16xf32, #tpu.memory_space<vmem>>) attributes {dimension_semantics = [#tpu.dimension_semantics<parallel>, #tpu.dimension_semantics<parallel>], iteration_bounds = array<i64: 2, 2>, scalar_prefetch = 4 : i64, scratch_operands = 0 : i64, tpu.core_type = #tpu.core_type<tc>, window_params = [{transform_indices = @transform_0, window_bounds = array<i64: 1, 4, 8, 16>}, {transform_indices = @transform_1, window_bounds = array<i64: 1, 4, 8, 16>}, {transform_indices = @transform_2, window_bounds = array<i64: 1, 4, 8, 16>}, {transform_indices = @transform_3, window_bounds = array<i64: 1, 8, 8, 16>}]} {
    %c0_i32 = arith.constant 0 : i32
    %0 = arith.cmpi sgt, %arg1, %c0_i32 : i32
    %c1_i32 = arith.constant 1 : i32
    %1 = arith.cmpi slt, %arg1, %c1_i32 : i32
    %c0 = arith.constant 0 : index
    %c0_0 = arith.constant 0 : index
    %c7 = arith.constant 7 : index
    %c0_1 = arith.constant 0 : index
    %2 = vector.load %arg7[%c0, %c0_0, %c7, %c0_1] : memref<1x4x8x16xf32, #tpu.memory_space<vmem>>, vector<1x1x1x16xf32>
    %3 = vector.shape_cast %2 : vector<1x1x1x16xf32> to vector<16xf32>
    %cst = arith.constant 0.000000e+00 : f32
    %4 = vector.broadcast %cst : f32 to vector<16xf32>
    %5 = arith.select %0, %3, %4 : vector<16xf32>
    %c0_2 = arith.constant 0 : index
    %c1 = arith.constant 1 : index
    %c7_3 = arith.constant 7 : index
    %c0_4 = arith.constant 0 : index
    %6 = vector.load %arg7[%c0_2, %c1, %c7_3, %c0_4] : memref<1x4x8x16xf32, #tpu.memory_space<vmem>>, vector<1x1x1x16xf32>
    %7 = vector.shape_cast %6 : vector<1x1x1x16xf32> to vector<16xf32>
    %cst_5 = arith.constant 0.000000e+00 : f32
    %8 = vector.broadcast %cst_5 : f32 to vector<16xf32>
    %9 = arith.select %0, %7, %8 : vector<16xf32>
    %c0_6 = arith.constant 0 : index
    %c2 = arith.constant 2 : index
    %c7_7 = arith.constant 7 : index
    %c0_8 = arith.constant 0 : index
    %10 = vector.load %arg7[%c0_6, %c2, %c7_7, %c0_8] : memref<1x4x8x16xf32, #tpu.memory_space<vmem>>, vector<1x1x1x16xf32>
    %11 = vector.shape_cast %10 : vector<1x1x1x16xf32> to vector<16xf32>
    %cst_9 = arith.constant 0.000000e+00 : f32
    %12 = vector.broadcast %cst_9 : f32 to vector<16xf32>
    %13 = arith.select %0, %11, %12 : vector<16xf32>
    %c0_10 = arith.constant 0 : index
    %c3 = arith.constant 3 : index
    %c7_11 = arith.constant 7 : index
    %c0_12 = arith.constant 0 : index
    %14 = vector.load %arg7[%c0_10, %c3, %c7_11, %c0_12] : memref<1x4x8x16xf32, #tpu.memory_space<vmem>>, vector<1x1x1x16xf32>
    %15 = vector.shape_cast %14 : vector<1x1x1x16xf32> to vector<16xf32>
    %cst_13 = arith.constant 0.000000e+00 : f32
    %16 = vector.broadcast %cst_13 : f32 to vector<16xf32>
    %17 = arith.select %0, %15, %16 : vector<16xf32>
    %c0_14 = arith.constant 0 : index
    %c0_15 = arith.constant 0 : index
    %c0_16 = arith.constant 0 : index
    %c0_17 = arith.constant 0 : index
    %18 = vector.load %arg8[%c0_14, %c0_15, %c0_16, %c0_17] : memref<1x4x8x16xf32, #tpu.memory_space<vmem>>, vector<1x1x1x16xf32>
    %19 = vector.shape_cast %18 : vector<1x1x1x16xf32> to vector<16xf32>
    %cst_18 = arith.constant 0.000000e+00 : f32
    %20 = vector.broadcast %cst_18 : f32 to vector<16xf32>
    %21 = arith.select %1, %19, %20 : vector<16xf32>
    %c0_19 = arith.constant 0 : index
    %c1_20 = arith.constant 1 : index
    %c0_21 = arith.constant 0 : index
    %c0_22 = arith.constant 0 : index
    %22 = vector.load %arg8[%c0_19, %c1_20, %c0_21, %c0_22] : memref<1x4x8x16xf32, #tpu.memory_space<vmem>>, vector<1x1x1x16xf32>
    %23 = vector.shape_cast %22 : vector<1x1x1x16xf32> to vector<16xf32>
    %cst_23 = arith.constant 0.000000e+00 : f32
    %24 = vector.broadcast %cst_23 : f32 to vector<16xf32>
    %25 = arith.select %1, %23, %24 : vector<16xf32>
    %c0_24 = arith.constant 0 : index
    %c2_25 = arith.constant 2 : index
    %c0_26 = arith.constant 0 : index
    %c0_27 = arith.constant 0 : index
    %26 = vector.load %arg8[%c0_24, %c2_25, %c0_26, %c0_27] : memref<1x4x8x16xf32, #tpu.memory_space<vmem>>, vector<1x1x1x16xf32>
    %27 = vector.shape_cast %26 : vector<1x1x1x16xf32> to vector<16xf32>
    %cst_28 = arith.constant 0.000000e+00 : f32
    %28 = vector.broadcast %cst_28 : f32 to vector<16xf32>
    %29 = arith.select %1, %27, %28 : vector<16xf32>
    %c0_29 = arith.constant 0 : index
    %c3_30 = arith.constant 3 : index
    %c0_31 = arith.constant 0 : index
    %c0_32 = arith.constant 0 : index
    %30 = vector.load %arg8[%c0_29, %c3_30, %c0_31, %c0_32] : memref<1x4x8x16xf32, #tpu.memory_space<vmem>>, vector<1x1x1x16xf32>
    %31 = vector.shape_cast %30 : vector<1x1x1x16xf32> to vector<16xf32>
    %cst_33 = arith.constant 0.000000e+00 : f32
    %32 = vector.broadcast %cst_33 : f32 to vector<16xf32>
    %33 = arith.select %1, %31, %32 : vector<16xf32>
    %cst_34 = arith.constant 0.000000e+00 : f32
    %34 = vector.broadcast %cst_34 : f32 to vector<8x1xf32>
    %c0_35 = arith.constant 0 : index
    %35 = memref.load %arg5[%c0_35] : memref<8xf32, #tpu.memory_space<smem>>
    %36 = vector.broadcast %35 : f32 to vector<8x16xf32>
    %c1_36 = arith.constant 1 : index
    %37 = memref.load %arg5[%c1_36] : memref<8xf32, #tpu.memory_space<smem>>
    %38 = vector.broadcast %37 : f32 to vector<8x16xf32>
    %c2_37 = arith.constant 2 : index
    %39 = memref.load %arg5[%c2_37] : memref<8xf32, #tpu.memory_space<smem>>
    %40 = vector.broadcast %39 : f32 to vector<8x16xf32>
    %c3_38 = arith.constant 3 : index
    %41 = memref.load %arg5[%c3_38] : memref<8xf32, #tpu.memory_space<smem>>
    %42 = vector.broadcast %41 : f32 to vector<8x16xf32>
    %c4 = arith.constant 4 : index
    %43 = memref.load %arg5[%c4] : memref<8xf32, #tpu.memory_space<smem>>
    %44 = vector.broadcast %43 : f32 to vector<8x16xf32>
    %c5 = arith.constant 5 : index
    %45 = memref.load %arg5[%c5] : memref<8xf32, #tpu.memory_space<smem>>
    %46 = vector.broadcast %45 : f32 to vector<8x16xf32>
    %c6 = arith.constant 6 : index
    %47 = memref.load %arg5[%c6] : memref<8xf32, #tpu.memory_space<smem>>
    %48 = vector.broadcast %47 : f32 to vector<8x16xf32>
    %c7_39 = arith.constant 7 : index
    %49 = memref.load %arg5[%c7_39] : memref<8xf32, #tpu.memory_space<smem>>
    %50 = vector.broadcast %49 : f32 to vector<8x16xf32>
    %c0_40 = arith.constant 0 : index
    %c0_41 = arith.constant 0 : index
    %c0_42 = arith.constant 0 : index
    %c0_43 = arith.constant 0 : index
    %51 = vector.load %arg6[%c0_40, %c0_41, %c0_42, %c0_43] : memref<1x4x8x16xf32, #tpu.memory_space<vmem>>, vector<1x1x8x16xf32>
    %52 = vector.shape_cast %51 : vector<1x1x8x16xf32> to vector<8x16xf32>
    %53 = vector.shape_cast %5 : vector<16xf32> to vector<1x16xf32>
    %54 = vector.extract_strided_slice %52 {offsets = [0, 0], sizes = [7, 16], strides = [1, 1]} : vector<8x16xf32> to vector<7x16xf32>
    %55 = tpu.concatenate %53, %54 in 0 : vector<1x16xf32>, vector<7x16xf32> -> vector<8x16xf32>
    %56 = vector.extract_strided_slice %52 {offsets = [1, 0], sizes = [7, 16], strides = [1, 1]} : vector<8x16xf32> to vector<7x16xf32>
    %57 = vector.shape_cast %21 : vector<16xf32> to vector<1x16xf32>
    %58 = tpu.concatenate %56, %57 in 0 : vector<7x16xf32>, vector<1x16xf32> -> vector<8x16xf32>
    %c0_44 = arith.constant 0 : index
    %59 = memref.load %arg3[%c0_44] : memref<4xf32, #tpu.memory_space<smem>>
    %60 = vector.broadcast %59 : f32 to vector<8x16xf32>
    %61 = vector.extract_strided_slice %55 {offsets = [0, 0], sizes = [8, 15], strides = [1, 1]} : vector<8x16xf32> to vector<8x15xf32>
    %62 = tpu.concatenate %34, %61 in 1 : vector<8x1xf32>, vector<8x15xf32> -> vector<8x16xf32>
    %c0_45 = arith.constant 0 : index
    %c0_46 = arith.constant 0 : index
    %63 = memref.load %arg2[%c0_45, %c0_46] : memref<9x4xf32, #tpu.memory_space<smem>>
    %64 = vector.broadcast %63 : f32 to vector<8x16xf32>
    %65 = arith.mulf %62, %64 : vector<8x16xf32>
    %66 = arith.addf %60, %65 : vector<8x16xf32>
    %c1_47 = arith.constant 1 : index
    %c0_48 = arith.constant 0 : index
    %67 = memref.load %arg2[%c1_47, %c0_48] : memref<9x4xf32, #tpu.memory_space<smem>>
    %68 = vector.broadcast %67 : f32 to vector<8x16xf32>
    %69 = arith.mulf %55, %68 : vector<8x16xf32>
    %70 = arith.addf %66, %69 : vector<8x16xf32>
    %71 = vector.extract_strided_slice %55 {offsets = [0, 1], sizes = [8, 15], strides = [1, 1]} : vector<8x16xf32> to vector<8x15xf32>
    %72 = tpu.concatenate %71, %34 in 1 : vector<8x15xf32>, vector<8x1xf32> -> vector<8x16xf32>
    %c2_49 = arith.constant 2 : index
    %c0_50 = arith.constant 0 : index
    %73 = memref.load %arg2[%c2_49, %c0_50] : memref<9x4xf32, #tpu.memory_space<smem>>
    %74 = vector.broadcast %73 : f32 to vector<8x16xf32>
    %75 = arith.mulf %72, %74 : vector<8x16xf32>
    %76 = arith.addf %70, %75 : vector<8x16xf32>
    %77 = vector.extract_strided_slice %52 {offsets = [0, 0], sizes = [8, 15], strides = [1, 1]} : vector<8x16xf32> to vector<8x15xf32>
    %78 = tpu.concatenate %34, %77 in 1 : vector<8x1xf32>, vector<8x15xf32> -> vector<8x16xf32>
    %c3_51 = arith.constant 3 : index
    %c0_52 = arith.constant 0 : index
    %79 = memref.load %arg2[%c3_51, %c0_52] : memref<9x4xf32, #tpu.memory_space<smem>>
    %80 = vector.broadcast %79 : f32 to vector<8x16xf32>
    %81 = arith.mulf %78, %80 : vector<8x16xf32>
    %82 = arith.addf %76, %81 : vector<8x16xf32>
    %c4_53 = arith.constant 4 : index
    %c0_54 = arith.constant 0 : index
    %83 = memref.load %arg2[%c4_53, %c0_54] : memref<9x4xf32, #tpu.memory_space<smem>>
    %84 = vector.broadcast %83 : f32 to vector<8x16xf32>
    %85 = arith.mulf %52, %84 : vector<8x16xf32>
    %86 = arith.addf %82, %85 : vector<8x16xf32>
    %87 = vector.extract_strided_slice %52 {offsets = [0, 1], sizes = [8, 15], strides = [1, 1]} : vector<8x16xf32> to vector<8x15xf32>
    %88 = tpu.concatenate %87, %34 in 1 : vector<8x15xf32>, vector<8x1xf32> -> vector<8x16xf32>
    %c5_55 = arith.constant 5 : index
    %c0_56 = arith.constant 0 : index
    %89 = memref.load %arg2[%c5_55, %c0_56] : memref<9x4xf32, #tpu.memory_space<smem>>
    %90 = vector.broadcast %89 : f32 to vector<8x16xf32>
    %91 = arith.mulf %88, %90 : vector<8x16xf32>
    %92 = arith.addf %86, %91 : vector<8x16xf32>
    %93 = vector.extract_strided_slice %58 {offsets = [0, 0], sizes = [8, 15], strides = [1, 1]} : vector<8x16xf32> to vector<8x15xf32>
    %94 = tpu.concatenate %34, %93 in 1 : vector<8x1xf32>, vector<8x15xf32> -> vector<8x16xf32>
    %c6_57 = arith.constant 6 : index
    %c0_58 = arith.constant 0 : index
    %95 = memref.load %arg2[%c6_57, %c0_58] : memref<9x4xf32, #tpu.memory_space<smem>>
    %96 = vector.broadcast %95 : f32 to vector<8x16xf32>
    %97 = arith.mulf %94, %96 : vector<8x16xf32>
    %98 = arith.addf %92, %97 : vector<8x16xf32>
    %c7_59 = arith.constant 7 : index
    %c0_60 = arith.constant 0 : index
    %99 = memref.load %arg2[%c7_59, %c0_60] : memref<9x4xf32, #tpu.memory_space<smem>>
    %100 = vector.broadcast %99 : f32 to vector<8x16xf32>
    %101 = arith.mulf %58, %100 : vector<8x16xf32>
    %102 = arith.addf %98, %101 : vector<8x16xf32>
    %103 = vector.extract_strided_slice %58 {offsets = [0, 1], sizes = [8, 15], strides = [1, 1]} : vector<8x16xf32> to vector<8x15xf32>
    %104 = tpu.concatenate %103, %34 in 1 : vector<8x15xf32>, vector<8x1xf32> -> vector<8x16xf32>
    %c8 = arith.constant 8 : index
    %c0_61 = arith.constant 0 : index
    %105 = memref.load %arg2[%c8, %c0_61] : memref<9x4xf32, #tpu.memory_space<smem>>
    %106 = vector.broadcast %105 : f32 to vector<8x16xf32>
    %107 = arith.mulf %104, %106 : vector<8x16xf32>
    %108 = arith.addf %102, %107 : vector<8x16xf32>
    %c0_62 = arith.constant 0 : index
    %c0_63 = arith.constant 0 : index
    %109 = memref.load %arg4[%c0_62, %c0_63] : memref<4x8xf32, #tpu.memory_space<smem>>
    %110 = vector.broadcast %109 : f32 to vector<8x16xf32>
    %111 = arith.mulf %108, %110 : vector<8x16xf32>
    %112 = arith.addf %36, %111 : vector<8x16xf32>
    %c0_64 = arith.constant 0 : index
    %c1_65 = arith.constant 1 : index
    %113 = memref.load %arg4[%c0_64, %c1_65] : memref<4x8xf32, #tpu.memory_space<smem>>
    %114 = vector.broadcast %113 : f32 to vector<8x16xf32>
    %115 = arith.mulf %108, %114 : vector<8x16xf32>
    %116 = arith.addf %38, %115 : vector<8x16xf32>
    %c0_66 = arith.constant 0 : index
    %c2_67 = arith.constant 2 : index
    %117 = memref.load %arg4[%c0_66, %c2_67] : memref<4x8xf32, #tpu.memory_space<smem>>
    %118 = vector.broadcast %117 : f32 to vector<8x16xf32>
    %119 = arith.mulf %108, %118 : vector<8x16xf32>
    %120 = arith.addf %40, %119 : vector<8x16xf32>
    %c0_68 = arith.constant 0 : index
    %c3_69 = arith.constant 3 : index
    %121 = memref.load %arg4[%c0_68, %c3_69] : memref<4x8xf32, #tpu.memory_space<smem>>
    %122 = vector.broadcast %121 : f32 to vector<8x16xf32>
    %123 = arith.mulf %108, %122 : vector<8x16xf32>
    %124 = arith.addf %42, %123 : vector<8x16xf32>
    %c0_70 = arith.constant 0 : index
    %c4_71 = arith.constant 4 : index
    %125 = memref.load %arg4[%c0_70, %c4_71] : memref<4x8xf32, #tpu.memory_space<smem>>
    %126 = vector.broadcast %125 : f32 to vector<8x16xf32>
    %127 = arith.mulf %108, %126 : vector<8x16xf32>
    %128 = arith.addf %44, %127 : vector<8x16xf32>
    %c0_72 = arith.constant 0 : index
    %c5_73 = arith.constant 5 : index
    %129 = memref.load %arg4[%c0_72, %c5_73] : memref<4x8xf32, #tpu.memory_space<smem>>
    %130 = vector.broadcast %129 : f32 to vector<8x16xf32>
    %131 = arith.mulf %108, %130 : vector<8x16xf32>
    %132 = arith.addf %46, %131 : vector<8x16xf32>
    %c0_74 = arith.constant 0 : index
    %c6_75 = arith.constant 6 : index
    %133 = memref.load %arg4[%c0_74, %c6_75] : memref<4x8xf32, #tpu.memory_space<smem>>
    %134 = vector.broadcast %133 : f32 to vector<8x16xf32>
    %135 = arith.mulf %108, %134 : vector<8x16xf32>
    %136 = arith.addf %48, %135 : vector<8x16xf32>
    %c0_76 = arith.constant 0 : index
    %c7_77 = arith.constant 7 : index
    %137 = memref.load %arg4[%c0_76, %c7_77] : memref<4x8xf32, #tpu.memory_space<smem>>
    %138 = vector.broadcast %137 : f32 to vector<8x16xf32>
    %139 = arith.mulf %108, %138 : vector<8x16xf32>
    %140 = arith.addf %50, %139 : vector<8x16xf32>
    %c0_78 = arith.constant 0 : index
    %c1_79 = arith.constant 1 : index
    %c0_80 = arith.constant 0 : index
    %c0_81 = arith.constant 0 : index
    %141 = vector.load %arg6[%c0_78, %c1_79, %c0_80, %c0_81] : memref<1x4x8x16xf32, #tpu.memory_space<vmem>>, vector<1x1x8x16xf32>
    %142 = vector.shape_cast %141 : vector<1x1x8x16xf32> to vector<8x16xf32>
    %143 = vector.shape_cast %9 : vector<16xf32> to vector<1x16xf32>
    %144 = vector.extract_strided_slice %142 {offsets = [0, 0], sizes = [7, 16], strides = [1, 1]} : vector<8x16xf32> to vector<7x16xf32>
    %145 = tpu.concatenate %143, %144 in 0 : vector<1x16xf32>, vector<7x16xf32> -> vector<8x16xf32>
    %146 = vector.extract_strided_slice %142 {offsets = [1, 0], sizes = [7, 16], strides = [1, 1]} : vector<8x16xf32> to vector<7x16xf32>
    %147 = vector.shape_cast %25 : vector<16xf32> to vector<1x16xf32>
    %148 = tpu.concatenate %146, %147 in 0 : vector<7x16xf32>, vector<1x16xf32> -> vector<8x16xf32>
    %c1_82 = arith.constant 1 : index
    %149 = memref.load %arg3[%c1_82] : memref<4xf32, #tpu.memory_space<smem>>
    %150 = vector.broadcast %149 : f32 to vector<8x16xf32>
    %151 = vector.extract_strided_slice %145 {offsets = [0, 0], sizes = [8, 15], strides = [1, 1]} : vector<8x16xf32> to vector<8x15xf32>
    %152 = tpu.concatenate %34, %151 in 1 : vector<8x1xf32>, vector<8x15xf32> -> vector<8x16xf32>
    %c0_83 = arith.constant 0 : index
    %c1_84 = arith.constant 1 : index
    %153 = memref.load %arg2[%c0_83, %c1_84] : memref<9x4xf32, #tpu.memory_space<smem>>
    %154 = vector.broadcast %153 : f32 to vector<8x16xf32>
    %155 = arith.mulf %152, %154 : vector<8x16xf32>
    %156 = arith.addf %150, %155 : vector<8x16xf32>
    %c1_85 = arith.constant 1 : index
    %c1_86 = arith.constant 1 : index
    %157 = memref.load %arg2[%c1_85, %c1_86] : memref<9x4xf32, #tpu.memory_space<smem>>
    %158 = vector.broadcast %157 : f32 to vector<8x16xf32>
    %159 = arith.mulf %145, %158 : vector<8x16xf32>
    %160 = arith.addf %156, %159 : vector<8x16xf32>
    %161 = vector.extract_strided_slice %145 {offsets = [0, 1], sizes = [8, 15], strides = [1, 1]} : vector<8x16xf32> to vector<8x15xf32>
    %162 = tpu.concatenate %161, %34 in 1 : vector<8x15xf32>, vector<8x1xf32> -> vector<8x16xf32>
    %c2_87 = arith.constant 2 : index
    %c1_88 = arith.constant 1 : index
    %163 = memref.load %arg2[%c2_87, %c1_88] : memref<9x4xf32, #tpu.memory_space<smem>>
    %164 = vector.broadcast %163 : f32 to vector<8x16xf32>
    %165 = arith.mulf %162, %164 : vector<8x16xf32>
    %166 = arith.addf %160, %165 : vector<8x16xf32>
    %167 = vector.extract_strided_slice %142 {offsets = [0, 0], sizes = [8, 15], strides = [1, 1]} : vector<8x16xf32> to vector<8x15xf32>
    %168 = tpu.concatenate %34, %167 in 1 : vector<8x1xf32>, vector<8x15xf32> -> vector<8x16xf32>
    %c3_89 = arith.constant 3 : index
    %c1_90 = arith.constant 1 : index
    %169 = memref.load %arg2[%c3_89, %c1_90] : memref<9x4xf32, #tpu.memory_space<smem>>
    %170 = vector.broadcast %169 : f32 to vector<8x16xf32>
    %171 = arith.mulf %168, %170 : vector<8x16xf32>
    %172 = arith.addf %166, %171 : vector<8x16xf32>
    %c4_91 = arith.constant 4 : index
    %c1_92 = arith.constant 1 : index
    %173 = memref.load %arg2[%c4_91, %c1_92] : memref<9x4xf32, #tpu.memory_space<smem>>
    %174 = vector.broadcast %173 : f32 to vector<8x16xf32>
    %175 = arith.mulf %142, %174 : vector<8x16xf32>
    %176 = arith.addf %172, %175 : vector<8x16xf32>
    %177 = vector.extract_strided_slice %142 {offsets = [0, 1], sizes = [8, 15], strides = [1, 1]} : vector<8x16xf32> to vector<8x15xf32>
    %178 = tpu.concatenate %177, %34 in 1 : vector<8x15xf32>, vector<8x1xf32> -> vector<8x16xf32>
    %c5_93 = arith.constant 5 : index
    %c1_94 = arith.constant 1 : index
    %179 = memref.load %arg2[%c5_93, %c1_94] : memref<9x4xf32, #tpu.memory_space<smem>>
    %180 = vector.broadcast %179 : f32 to vector<8x16xf32>
    %181 = arith.mulf %178, %180 : vector<8x16xf32>
    %182 = arith.addf %176, %181 : vector<8x16xf32>
    %183 = vector.extract_strided_slice %148 {offsets = [0, 0], sizes = [8, 15], strides = [1, 1]} : vector<8x16xf32> to vector<8x15xf32>
    %184 = tpu.concatenate %34, %183 in 1 : vector<8x1xf32>, vector<8x15xf32> -> vector<8x16xf32>
    %c6_95 = arith.constant 6 : index
    %c1_96 = arith.constant 1 : index
    %185 = memref.load %arg2[%c6_95, %c1_96] : memref<9x4xf32, #tpu.memory_space<smem>>
    %186 = vector.broadcast %185 : f32 to vector<8x16xf32>
    %187 = arith.mulf %184, %186 : vector<8x16xf32>
    %188 = arith.addf %182, %187 : vector<8x16xf32>
    %c7_97 = arith.constant 7 : index
    %c1_98 = arith.constant 1 : index
    %189 = memref.load %arg2[%c7_97, %c1_98] : memref<9x4xf32, #tpu.memory_space<smem>>
    %190 = vector.broadcast %189 : f32 to vector<8x16xf32>
    %191 = arith.mulf %148, %190 : vector<8x16xf32>
    %192 = arith.addf %188, %191 : vector<8x16xf32>
    %193 = vector.extract_strided_slice %148 {offsets = [0, 1], sizes = [8, 15], strides = [1, 1]} : vector<8x16xf32> to vector<8x15xf32>
    %194 = tpu.concatenate %193, %34 in 1 : vector<8x15xf32>, vector<8x1xf32> -> vector<8x16xf32>
    %c8_99 = arith.constant 8 : index
    %c1_100 = arith.constant 1 : index
    %195 = memref.load %arg2[%c8_99, %c1_100] : memref<9x4xf32, #tpu.memory_space<smem>>
    %196 = vector.broadcast %195 : f32 to vector<8x16xf32>
    %197 = arith.mulf %194, %196 : vector<8x16xf32>
    %198 = arith.addf %192, %197 : vector<8x16xf32>
    %c1_101 = arith.constant 1 : index
    %c0_102 = arith.constant 0 : index
    %199 = memref.load %arg4[%c1_101, %c0_102] : memref<4x8xf32, #tpu.memory_space<smem>>
    %200 = vector.broadcast %199 : f32 to vector<8x16xf32>
    %201 = arith.mulf %198, %200 : vector<8x16xf32>
    %202 = arith.addf %112, %201 : vector<8x16xf32>
    %c1_103 = arith.constant 1 : index
    %c1_104 = arith.constant 1 : index
    %203 = memref.load %arg4[%c1_103, %c1_104] : memref<4x8xf32, #tpu.memory_space<smem>>
    %204 = vector.broadcast %203 : f32 to vector<8x16xf32>
    %205 = arith.mulf %198, %204 : vector<8x16xf32>
    %206 = arith.addf %116, %205 : vector<8x16xf32>
    %c1_105 = arith.constant 1 : index
    %c2_106 = arith.constant 2 : index
    %207 = memref.load %arg4[%c1_105, %c2_106] : memref<4x8xf32, #tpu.memory_space<smem>>
    %208 = vector.broadcast %207 : f32 to vector<8x16xf32>
    %209 = arith.mulf %198, %208 : vector<8x16xf32>
    %210 = arith.addf %120, %209 : vector<8x16xf32>
    %c1_107 = arith.constant 1 : index
    %c3_108 = arith.constant 3 : index
    %211 = memref.load %arg4[%c1_107, %c3_108] : memref<4x8xf32, #tpu.memory_space<smem>>
    %212 = vector.broadcast %211 : f32 to vector<8x16xf32>
    %213 = arith.mulf %198, %212 : vector<8x16xf32>
    %214 = arith.addf %124, %213 : vector<8x16xf32>
    %c1_109 = arith.constant 1 : index
    %c4_110 = arith.constant 4 : index
    %215 = memref.load %arg4[%c1_109, %c4_110] : memref<4x8xf32, #tpu.memory_space<smem>>
    %216 = vector.broadcast %215 : f32 to vector<8x16xf32>
    %217 = arith.mulf %198, %216 : vector<8x16xf32>
    %218 = arith.addf %128, %217 : vector<8x16xf32>
    %c1_111 = arith.constant 1 : index
    %c5_112 = arith.constant 5 : index
    %219 = memref.load %arg4[%c1_111, %c5_112] : memref<4x8xf32, #tpu.memory_space<smem>>
    %220 = vector.broadcast %219 : f32 to vector<8x16xf32>
    %221 = arith.mulf %198, %220 : vector<8x16xf32>
    %222 = arith.addf %132, %221 : vector<8x16xf32>
    %c1_113 = arith.constant 1 : index
    %c6_114 = arith.constant 6 : index
    %223 = memref.load %arg4[%c1_113, %c6_114] : memref<4x8xf32, #tpu.memory_space<smem>>
    %224 = vector.broadcast %223 : f32 to vector<8x16xf32>
    %225 = arith.mulf %198, %224 : vector<8x16xf32>
    %226 = arith.addf %136, %225 : vector<8x16xf32>
    %c1_115 = arith.constant 1 : index
    %c7_116 = arith.constant 7 : index
    %227 = memref.load %arg4[%c1_115, %c7_116] : memref<4x8xf32, #tpu.memory_space<smem>>
    %228 = vector.broadcast %227 : f32 to vector<8x16xf32>
    %229 = arith.mulf %198, %228 : vector<8x16xf32>
    %230 = arith.addf %140, %229 : vector<8x16xf32>
    %c0_117 = arith.constant 0 : index
    %c2_118 = arith.constant 2 : index
    %c0_119 = arith.constant 0 : index
    %c0_120 = arith.constant 0 : index
    %231 = vector.load %arg6[%c0_117, %c2_118, %c0_119, %c0_120] : memref<1x4x8x16xf32, #tpu.memory_space<vmem>>, vector<1x1x8x16xf32>
    %232 = vector.shape_cast %231 : vector<1x1x8x16xf32> to vector<8x16xf32>
    %233 = vector.shape_cast %13 : vector<16xf32> to vector<1x16xf32>
    %234 = vector.extract_strided_slice %232 {offsets = [0, 0], sizes = [7, 16], strides = [1, 1]} : vector<8x16xf32> to vector<7x16xf32>
    %235 = tpu.concatenate %233, %234 in 0 : vector<1x16xf32>, vector<7x16xf32> -> vector<8x16xf32>
    %236 = vector.extract_strided_slice %232 {offsets = [1, 0], sizes = [7, 16], strides = [1, 1]} : vector<8x16xf32> to vector<7x16xf32>
    %237 = vector.shape_cast %29 : vector<16xf32> to vector<1x16xf32>
    %238 = tpu.concatenate %236, %237 in 0 : vector<7x16xf32>, vector<1x16xf32> -> vector<8x16xf32>
    %c2_121 = arith.constant 2 : index
    %239 = memref.load %arg3[%c2_121] : memref<4xf32, #tpu.memory_space<smem>>
    %240 = vector.broadcast %239 : f32 to vector<8x16xf32>
    %241 = vector.extract_strided_slice %235 {offsets = [0, 0], sizes = [8, 15], strides = [1, 1]} : vector<8x16xf32> to vector<8x15xf32>
    %242 = tpu.concatenate %34, %241 in 1 : vector<8x1xf32>, vector<8x15xf32> -> vector<8x16xf32>
    %c0_122 = arith.constant 0 : index
    %c2_123 = arith.constant 2 : index
    %243 = memref.load %arg2[%c0_122, %c2_123] : memref<9x4xf32, #tpu.memory_space<smem>>
    %244 = vector.broadcast %243 : f32 to vector<8x16xf32>
    %245 = arith.mulf %242, %244 : vector<8x16xf32>
    %246 = arith.addf %240, %245 : vector<8x16xf32>
    %c1_124 = arith.constant 1 : index
    %c2_125 = arith.constant 2 : index
    %247 = memref.load %arg2[%c1_124, %c2_125] : memref<9x4xf32, #tpu.memory_space<smem>>
    %248 = vector.broadcast %247 : f32 to vector<8x16xf32>
    %249 = arith.mulf %235, %248 : vector<8x16xf32>
    %250 = arith.addf %246, %249 : vector<8x16xf32>
    %251 = vector.extract_strided_slice %235 {offsets = [0, 1], sizes = [8, 15], strides = [1, 1]} : vector<8x16xf32> to vector<8x15xf32>
    %252 = tpu.concatenate %251, %34 in 1 : vector<8x15xf32>, vector<8x1xf32> -> vector<8x16xf32>
    %c2_126 = arith.constant 2 : index
    %c2_127 = arith.constant 2 : index
    %253 = memref.load %arg2[%c2_126, %c2_127] : memref<9x4xf32, #tpu.memory_space<smem>>
    %254 = vector.broadcast %253 : f32 to vector<8x16xf32>
    %255 = arith.mulf %252, %254 : vector<8x16xf32>
    %256 = arith.addf %250, %255 : vector<8x16xf32>
    %257 = vector.extract_strided_slice %232 {offsets = [0, 0], sizes = [8, 15], strides = [1, 1]} : vector<8x16xf32> to vector<8x15xf32>
    %258 = tpu.concatenate %34, %257 in 1 : vector<8x1xf32>, vector<8x15xf32> -> vector<8x16xf32>
    %c3_128 = arith.constant 3 : index
    %c2_129 = arith.constant 2 : index
    %259 = memref.load %arg2[%c3_128, %c2_129] : memref<9x4xf32, #tpu.memory_space<smem>>
    %260 = vector.broadcast %259 : f32 to vector<8x16xf32>
    %261 = arith.mulf %258, %260 : vector<8x16xf32>
    %262 = arith.addf %256, %261 : vector<8x16xf32>
    %c4_130 = arith.constant 4 : index
    %c2_131 = arith.constant 2 : index
    %263 = memref.load %arg2[%c4_130, %c2_131] : memref<9x4xf32, #tpu.memory_space<smem>>
    %264 = vector.broadcast %263 : f32 to vector<8x16xf32>
    %265 = arith.mulf %232, %264 : vector<8x16xf32>
    %266 = arith.addf %262, %265 : vector<8x16xf32>
    %267 = vector.extract_strided_slice %232 {offsets = [0, 1], sizes = [8, 15], strides = [1, 1]} : vector<8x16xf32> to vector<8x15xf32>
    %268 = tpu.concatenate %267, %34 in 1 : vector<8x15xf32>, vector<8x1xf32> -> vector<8x16xf32>
    %c5_132 = arith.constant 5 : index
    %c2_133 = arith.constant 2 : index
    %269 = memref.load %arg2[%c5_132, %c2_133] : memref<9x4xf32, #tpu.memory_space<smem>>
    %270 = vector.broadcast %269 : f32 to vector<8x16xf32>
    %271 = arith.mulf %268, %270 : vector<8x16xf32>
    %272 = arith.addf %266, %271 : vector<8x16xf32>
    %273 = vector.extract_strided_slice %238 {offsets = [0, 0], sizes = [8, 15], strides = [1, 1]} : vector<8x16xf32> to vector<8x15xf32>
    %274 = tpu.concatenate %34, %273 in 1 : vector<8x1xf32>, vector<8x15xf32> -> vector<8x16xf32>
    %c6_134 = arith.constant 6 : index
    %c2_135 = arith.constant 2 : index
    %275 = memref.load %arg2[%c6_134, %c2_135] : memref<9x4xf32, #tpu.memory_space<smem>>
    %276 = vector.broadcast %275 : f32 to vector<8x16xf32>
    %277 = arith.mulf %274, %276 : vector<8x16xf32>
    %278 = arith.addf %272, %277 : vector<8x16xf32>
    %c7_136 = arith.constant 7 : index
    %c2_137 = arith.constant 2 : index
    %279 = memref.load %arg2[%c7_136, %c2_137] : memref<9x4xf32, #tpu.memory_space<smem>>
    %280 = vector.broadcast %279 : f32 to vector<8x16xf32>
    %281 = arith.mulf %238, %280 : vector<8x16xf32>
    %282 = arith.addf %278, %281 : vector<8x16xf32>
    %283 = vector.extract_strided_slice %238 {offsets = [0, 1], sizes = [8, 15], strides = [1, 1]} : vector<8x16xf32> to vector<8x15xf32>
    %284 = tpu.concatenate %283, %34 in 1 : vector<8x15xf32>, vector<8x1xf32> -> vector<8x16xf32>
    %c8_138 = arith.constant 8 : index
    %c2_139 = arith.constant 2 : index
    %285 = memref.load %arg2[%c8_138, %c2_139] : memref<9x4xf32, #tpu.memory_space<smem>>
    %286 = vector.broadcast %285 : f32 to vector<8x16xf32>
    %287 = arith.mulf %284, %286 : vector<8x16xf32>
    %288 = arith.addf %282, %287 : vector<8x16xf32>
    %c2_140 = arith.constant 2 : index
    %c0_141 = arith.constant 0 : index
    %289 = memref.load %arg4[%c2_140, %c0_141] : memref<4x8xf32, #tpu.memory_space<smem>>
    %290 = vector.broadcast %289 : f32 to vector<8x16xf32>
    %291 = arith.mulf %288, %290 : vector<8x16xf32>
    %292 = arith.addf %202, %291 : vector<8x16xf32>
    %c2_142 = arith.constant 2 : index
    %c1_143 = arith.constant 1 : index
    %293 = memref.load %arg4[%c2_142, %c1_143] : memref<4x8xf32, #tpu.memory_space<smem>>
    %294 = vector.broadcast %293 : f32 to vector<8x16xf32>
    %295 = arith.mulf %288, %294 : vector<8x16xf32>
    %296 = arith.addf %206, %295 : vector<8x16xf32>
    %c2_144 = arith.constant 2 : index
    %c2_145 = arith.constant 2 : index
    %297 = memref.load %arg4[%c2_144, %c2_145] : memref<4x8xf32, #tpu.memory_space<smem>>
    %298 = vector.broadcast %297 : f32 to vector<8x16xf32>
    %299 = arith.mulf %288, %298 : vector<8x16xf32>
    %300 = arith.addf %210, %299 : vector<8x16xf32>
    %c2_146 = arith.constant 2 : index
    %c3_147 = arith.constant 3 : index
    %301 = memref.load %arg4[%c2_146, %c3_147] : memref<4x8xf32, #tpu.memory_space<smem>>
    %302 = vector.broadcast %301 : f32 to vector<8x16xf32>
    %303 = arith.mulf %288, %302 : vector<8x16xf32>
    %304 = arith.addf %214, %303 : vector<8x16xf32>
    %c2_148 = arith.constant 2 : index
    %c4_149 = arith.constant 4 : index
    %305 = memref.load %arg4[%c2_148, %c4_149] : memref<4x8xf32, #tpu.memory_space<smem>>
    %306 = vector.broadcast %305 : f32 to vector<8x16xf32>
    %307 = arith.mulf %288, %306 : vector<8x16xf32>
    %308 = arith.addf %218, %307 : vector<8x16xf32>
    %c2_150 = arith.constant 2 : index
    %c5_151 = arith.constant 5 : index
    %309 = memref.load %arg4[%c2_150, %c5_151] : memref<4x8xf32, #tpu.memory_space<smem>>
    %310 = vector.broadcast %309 : f32 to vector<8x16xf32>
    %311 = arith.mulf %288, %310 : vector<8x16xf32>
    %312 = arith.addf %222, %311 : vector<8x16xf32>
    %c2_152 = arith.constant 2 : index
    %c6_153 = arith.constant 6 : index
    %313 = memref.load %arg4[%c2_152, %c6_153] : memref<4x8xf32, #tpu.memory_space<smem>>
    %314 = vector.broadcast %313 : f32 to vector<8x16xf32>
    %315 = arith.mulf %288, %314 : vector<8x16xf32>
    %316 = arith.addf %226, %315 : vector<8x16xf32>
    %c2_154 = arith.constant 2 : index
    %c7_155 = arith.constant 7 : index
    %317 = memref.load %arg4[%c2_154, %c7_155] : memref<4x8xf32, #tpu.memory_space<smem>>
    %318 = vector.broadcast %317 : f32 to vector<8x16xf32>
    %319 = arith.mulf %288, %318 : vector<8x16xf32>
    %320 = arith.addf %230, %319 : vector<8x16xf32>
    %c0_156 = arith.constant 0 : index
    %c3_157 = arith.constant 3 : index
    %c0_158 = arith.constant 0 : index
    %c0_159 = arith.constant 0 : index
    %321 = vector.load %arg6[%c0_156, %c3_157, %c0_158, %c0_159] : memref<1x4x8x16xf32, #tpu.memory_space<vmem>>, vector<1x1x8x16xf32>
    %322 = vector.shape_cast %321 : vector<1x1x8x16xf32> to vector<8x16xf32>
    %323 = vector.shape_cast %17 : vector<16xf32> to vector<1x16xf32>
    %324 = vector.extract_strided_slice %322 {offsets = [0, 0], sizes = [7, 16], strides = [1, 1]} : vector<8x16xf32> to vector<7x16xf32>
    %325 = tpu.concatenate %323, %324 in 0 : vector<1x16xf32>, vector<7x16xf32> -> vector<8x16xf32>
    %326 = vector.extract_strided_slice %322 {offsets = [1, 0], sizes = [7, 16], strides = [1, 1]} : vector<8x16xf32> to vector<7x16xf32>
    %327 = vector.shape_cast %33 : vector<16xf32> to vector<1x16xf32>
    %328 = tpu.concatenate %326, %327 in 0 : vector<7x16xf32>, vector<1x16xf32> -> vector<8x16xf32>
    %c3_160 = arith.constant 3 : index
    %329 = memref.load %arg3[%c3_160] : memref<4xf32, #tpu.memory_space<smem>>
    %330 = vector.broadcast %329 : f32 to vector<8x16xf32>
    %331 = vector.extract_strided_slice %325 {offsets = [0, 0], sizes = [8, 15], strides = [1, 1]} : vector<8x16xf32> to vector<8x15xf32>
    %332 = tpu.concatenate %34, %331 in 1 : vector<8x1xf32>, vector<8x15xf32> -> vector<8x16xf32>
    %c0_161 = arith.constant 0 : index
    %c3_162 = arith.constant 3 : index
    %333 = memref.load %arg2[%c0_161, %c3_162] : memref<9x4xf32, #tpu.memory_space<smem>>
    %334 = vector.broadcast %333 : f32 to vector<8x16xf32>
    %335 = arith.mulf %332, %334 : vector<8x16xf32>
    %336 = arith.addf %330, %335 : vector<8x16xf32>
    %c1_163 = arith.constant 1 : index
    %c3_164 = arith.constant 3 : index
    %337 = memref.load %arg2[%c1_163, %c3_164] : memref<9x4xf32, #tpu.memory_space<smem>>
    %338 = vector.broadcast %337 : f32 to vector<8x16xf32>
    %339 = arith.mulf %325, %338 : vector<8x16xf32>
    %340 = arith.addf %336, %339 : vector<8x16xf32>
    %341 = vector.extract_strided_slice %325 {offsets = [0, 1], sizes = [8, 15], strides = [1, 1]} : vector<8x16xf32> to vector<8x15xf32>
    %342 = tpu.concatenate %341, %34 in 1 : vector<8x15xf32>, vector<8x1xf32> -> vector<8x16xf32>
    %c2_165 = arith.constant 2 : index
    %c3_166 = arith.constant 3 : index
    %343 = memref.load %arg2[%c2_165, %c3_166] : memref<9x4xf32, #tpu.memory_space<smem>>
    %344 = vector.broadcast %343 : f32 to vector<8x16xf32>
    %345 = arith.mulf %342, %344 : vector<8x16xf32>
    %346 = arith.addf %340, %345 : vector<8x16xf32>
    %347 = vector.extract_strided_slice %322 {offsets = [0, 0], sizes = [8, 15], strides = [1, 1]} : vector<8x16xf32> to vector<8x15xf32>
    %348 = tpu.concatenate %34, %347 in 1 : vector<8x1xf32>, vector<8x15xf32> -> vector<8x16xf32>
    %c3_167 = arith.constant 3 : index
    %c3_168 = arith.constant 3 : index
    %349 = memref.load %arg2[%c3_167, %c3_168] : memref<9x4xf32, #tpu.memory_space<smem>>
    %350 = vector.broadcast %349 : f32 to vector<8x16xf32>
    %351 = arith.mulf %348, %350 : vector<8x16xf32>
    %352 = arith.addf %346, %351 : vector<8x16xf32>
    %c4_169 = arith.constant 4 : index
    %c3_170 = arith.constant 3 : index
    %353 = memref.load %arg2[%c4_169, %c3_170] : memref<9x4xf32, #tpu.memory_space<smem>>
    %354 = vector.broadcast %353 : f32 to vector<8x16xf32>
    %355 = arith.mulf %322, %354 : vector<8x16xf32>
    %356 = arith.addf %352, %355 : vector<8x16xf32>
    %357 = vector.extract_strided_slice %322 {offsets = [0, 1], sizes = [8, 15], strides = [1, 1]} : vector<8x16xf32> to vector<8x15xf32>
    %358 = tpu.concatenate %357, %34 in 1 : vector<8x15xf32>, vector<8x1xf32> -> vector<8x16xf32>
    %c5_171 = arith.constant 5 : index
    %c3_172 = arith.constant 3 : index
    %359 = memref.load %arg2[%c5_171, %c3_172] : memref<9x4xf32, #tpu.memory_space<smem>>
    %360 = vector.broadcast %359 : f32 to vector<8x16xf32>
    %361 = arith.mulf %358, %360 : vector<8x16xf32>
    %362 = arith.addf %356, %361 : vector<8x16xf32>
    %363 = vector.extract_strided_slice %328 {offsets = [0, 0], sizes = [8, 15], strides = [1, 1]} : vector<8x16xf32> to vector<8x15xf32>
    %364 = tpu.concatenate %34, %363 in 1 : vector<8x1xf32>, vector<8x15xf32> -> vector<8x16xf32>
    %c6_173 = arith.constant 6 : index
    %c3_174 = arith.constant 3 : index
    %365 = memref.load %arg2[%c6_173, %c3_174] : memref<9x4xf32, #tpu.memory_space<smem>>
    %366 = vector.broadcast %365 : f32 to vector<8x16xf32>
    %367 = arith.mulf %364, %366 : vector<8x16xf32>
    %368 = arith.addf %362, %367 : vector<8x16xf32>
    %c7_175 = arith.constant 7 : index
    %c3_176 = arith.constant 3 : index
    %369 = memref.load %arg2[%c7_175, %c3_176] : memref<9x4xf32, #tpu.memory_space<smem>>
    %370 = vector.broadcast %369 : f32 to vector<8x16xf32>
    %371 = arith.mulf %328, %370 : vector<8x16xf32>
    %372 = arith.addf %368, %371 : vector<8x16xf32>
    %373 = vector.extract_strided_slice %328 {offsets = [0, 1], sizes = [8, 15], strides = [1, 1]} : vector<8x16xf32> to vector<8x15xf32>
    %374 = tpu.concatenate %373, %34 in 1 : vector<8x15xf32>, vector<8x1xf32> -> vector<8x16xf32>
    %c8_177 = arith.constant 8 : index
    %c3_178 = arith.constant 3 : index
    %375 = memref.load %arg2[%c8_177, %c3_178] : memref<9x4xf32, #tpu.memory_space<smem>>
    %376 = vector.broadcast %375 : f32 to vector<8x16xf32>
    %377 = arith.mulf %374, %376 : vector<8x16xf32>
    %378 = arith.addf %372, %377 : vector<8x16xf32>
    %c3_179 = arith.constant 3 : index
    %c0_180 = arith.constant 0 : index
    %379 = memref.load %arg4[%c3_179, %c0_180] : memref<4x8xf32, #tpu.memory_space<smem>>
    %380 = vector.broadcast %379 : f32 to vector<8x16xf32>
    %381 = arith.mulf %378, %380 : vector<8x16xf32>
    %382 = arith.addf %292, %381 : vector<8x16xf32>
    %c3_181 = arith.constant 3 : index
    %c1_182 = arith.constant 1 : index
    %383 = memref.load %arg4[%c3_181, %c1_182] : memref<4x8xf32, #tpu.memory_space<smem>>
    %384 = vector.broadcast %383 : f32 to vector<8x16xf32>
    %385 = arith.mulf %378, %384 : vector<8x16xf32>
    %386 = arith.addf %296, %385 : vector<8x16xf32>
    %c3_183 = arith.constant 3 : index
    %c2_184 = arith.constant 2 : index
    %387 = memref.load %arg4[%c3_183, %c2_184] : memref<4x8xf32, #tpu.memory_space<smem>>
    %388 = vector.broadcast %387 : f32 to vector<8x16xf32>
    %389 = arith.mulf %378, %388 : vector<8x16xf32>
    %390 = arith.addf %300, %389 : vector<8x16xf32>
    %c3_185 = arith.constant 3 : index
    %c3_186 = arith.constant 3 : index
    %391 = memref.load %arg4[%c3_185, %c3_186] : memref<4x8xf32, #tpu.memory_space<smem>>
    %392 = vector.broadcast %391 : f32 to vector<8x16xf32>
    %393 = arith.mulf %378, %392 : vector<8x16xf32>
    %394 = arith.addf %304, %393 : vector<8x16xf32>
    %c3_187 = arith.constant 3 : index
    %c4_188 = arith.constant 4 : index
    %395 = memref.load %arg4[%c3_187, %c4_188] : memref<4x8xf32, #tpu.memory_space<smem>>
    %396 = vector.broadcast %395 : f32 to vector<8x16xf32>
    %397 = arith.mulf %378, %396 : vector<8x16xf32>
    %398 = arith.addf %308, %397 : vector<8x16xf32>
    %c3_189 = arith.constant 3 : index
    %c5_190 = arith.constant 5 : index
    %399 = memref.load %arg4[%c3_189, %c5_190] : memref<4x8xf32, #tpu.memory_space<smem>>
    %400 = vector.broadcast %399 : f32 to vector<8x16xf32>
    %401 = arith.mulf %378, %400 : vector<8x16xf32>
    %402 = arith.addf %312, %401 : vector<8x16xf32>
    %c3_191 = arith.constant 3 : index
    %c6_192 = arith.constant 6 : index
    %403 = memref.load %arg4[%c3_191, %c6_192] : memref<4x8xf32, #tpu.memory_space<smem>>
    %404 = vector.broadcast %403 : f32 to vector<8x16xf32>
    %405 = arith.mulf %378, %404 : vector<8x16xf32>
    %406 = arith.addf %316, %405 : vector<8x16xf32>
    %c3_193 = arith.constant 3 : index
    %c7_194 = arith.constant 7 : index
    %407 = memref.load %arg4[%c3_193, %c7_194] : memref<4x8xf32, #tpu.memory_space<smem>>
    %408 = vector.broadcast %407 : f32 to vector<8x16xf32>
    %409 = arith.mulf %378, %408 : vector<8x16xf32>
    %410 = arith.addf %320, %409 : vector<8x16xf32>
    %c0_195 = arith.constant 0 : index
    %c0_196 = arith.constant 0 : index
    %c0_197 = arith.constant 0 : index
    %c0_198 = arith.constant 0 : index
    %411 = vector.load %arg9[%c0_195, %c0_196, %c0_197, %c0_198] : memref<1x8x8x16xf32, #tpu.memory_space<vmem>>, vector<1x1x8x16xf32>
    %412 = vector.shape_cast %411 : vector<1x1x8x16xf32> to vector<8x16xf32>
    %413 = vector.shape_cast %382 : vector<8x16xf32> to vector<1x1x8x16xf32>
    tpu.vector_store %arg9[%c0_195, %c0_196, %c0_197, %c0_198], %413 {strides = array<i32>} : memref<1x8x8x16xf32, #tpu.memory_space<vmem>>, vector<1x1x8x16xf32>,
    %c0_199 = arith.constant 0 : index
    %c1_200 = arith.constant 1 : index
    %c0_201 = arith.constant 0 : index
    %c0_202 = arith.constant 0 : index
    %414 = vector.load %arg9[%c0_199, %c1_200, %c0_201, %c0_202] : memref<1x8x8x16xf32, #tpu.memory_space<vmem>>, vector<1x1x8x16xf32>
    %415 = vector.shape_cast %414 : vector<1x1x8x16xf32> to vector<8x16xf32>
    %416 = vector.shape_cast %386 : vector<8x16xf32> to vector<1x1x8x16xf32>
    tpu.vector_store %arg9[%c0_199, %c1_200, %c0_201, %c0_202], %416 {strides = array<i32>} : memref<1x8x8x16xf32, #tpu.memory_space<vmem>>, vector<1x1x8x16xf32>,
    %c0_203 = arith.constant 0 : index
    %c2_204 = arith.constant 2 : index
    %c0_205 = arith.constant 0 : index
    %c0_206 = arith.constant 0 : index
    %417 = vector.load %arg9[%c0_203, %c2_204, %c0_205, %c0_206] : memref<1x8x8x16xf32, #tpu.memory_space<vmem>>, vector<1x1x8x16xf32>
    %418 = vector.shape_cast %417 : vector<1x1x8x16xf32> to vector<8x16xf32>
    %419 = vector.shape_cast %390 : vector<8x16xf32> to vector<1x1x8x16xf32>
    tpu.vector_store %arg9[%c0_203, %c2_204, %c0_205, %c0_206], %419 {strides = array<i32>} : memref<1x8x8x16xf32, #tpu.memory_space<vmem>>, vector<1x1x8x16xf32>,
    %c0_207 = arith.constant 0 : index
    %c3_208 = arith.constant 3 : index
    %c0_209 = arith.constant 0 : index
    %c0_210 = arith.constant 0 : index
    %420 = vector.load %arg9[%c0_207, %c3_208, %c0_209, %c0_210] : memref<1x8x8x16xf32, #tpu.memory_space<vmem>>, vector<1x1x8x16xf32>
    %421 = vector.shape_cast %420 : vector<1x1x8x16xf32> to vector<8x16xf32>
    %422 = vector.shape_cast %394 : vector<8x16xf32> to vector<1x1x8x16xf32>
    tpu.vector_store %arg9[%c0_207, %c3_208, %c0_209, %c0_210], %422 {strides = array<i32>} : memref<1x8x8x16xf32, #tpu.memory_space<vmem>>, vector<1x1x8x16xf32>,
    %c0_211 = arith.constant 0 : index
    %c4_212 = arith.constant 4 : index
    %c0_213 = arith.constant 0 : index
    %c0_214 = arith.constant 0 : index
    %423 = vector.load %arg9[%c0_211, %c4_212, %c0_213, %c0_214] : memref<1x8x8x16xf32, #tpu.memory_space<vmem>>, vector<1x1x8x16xf32>
    %424 = vector.shape_cast %423 : vector<1x1x8x16xf32> to vector<8x16xf32>
    %425 = vector.shape_cast %398 : vector<8x16xf32> to vector<1x1x8x16xf32>
    tpu.vector_store %arg9[%c0_211, %c4_212, %c0_213, %c0_214], %425 {strides = array<i32>} : memref<1x8x8x16xf32, #tpu.memory_space<vmem>>, vector<1x1x8x16xf32>,
    %c0_215 = arith.constant 0 : index
    %c5_216 = arith.constant 5 : index
    %c0_217 = arith.constant 0 : index
    %c0_218 = arith.constant 0 : index
    %426 = vector.load %arg9[%c0_215, %c5_216, %c0_217, %c0_218] : memref<1x8x8x16xf32, #tpu.memory_space<vmem>>, vector<1x1x8x16xf32>
    %427 = vector.shape_cast %426 : vector<1x1x8x16xf32> to vector<8x16xf32>
    %428 = vector.shape_cast %402 : vector<8x16xf32> to vector<1x1x8x16xf32>
    tpu.vector_store %arg9[%c0_215, %c5_216, %c0_217, %c0_218], %428 {strides = array<i32>} : memref<1x8x8x16xf32, #tpu.memory_space<vmem>>, vector<1x1x8x16xf32>,
    %c0_219 = arith.constant 0 : index
    %c6_220 = arith.constant 6 : index
    %c0_221 = arith.constant 0 : index
    %c0_222 = arith.constant 0 : index
    %429 = vector.load %arg9[%c0_219, %c6_220, %c0_221, %c0_222] : memref<1x8x8x16xf32, #tpu.memory_space<vmem>>, vector<1x1x8x16xf32>
    %430 = vector.shape_cast %429 : vector<1x1x8x16xf32> to vector<8x16xf32>
    %431 = vector.shape_cast %406 : vector<8x16xf32> to vector<1x1x8x16xf32>
    tpu.vector_store %arg9[%c0_219, %c6_220, %c0_221, %c0_222], %431 {strides = array<i32>} : memref<1x8x8x16xf32, #tpu.memory_space<vmem>>, vector<1x1x8x16xf32>,
    %c0_223 = arith.constant 0 : index
    %c7_224 = arith.constant 7 : index
    %c0_225 = arith.constant 0 : index
    %c0_226 = arith.constant 0 : index
    %432 = vector.load %arg9[%c0_223, %c7_224, %c0_225, %c0_226] : memref<1x8x8x16xf32, #tpu.memory_space<vmem>>, vector<1x1x8x16xf32>
    %433 = vector.shape_cast %432 : vector<1x1x8x16xf32> to vector<8x16xf32>
    %434 = vector.shape_cast %410 : vector<8x16xf32> to vector<1x1x8x16xf32>
    tpu.vector_store %arg9[%c0_223, %c7_224, %c0_225, %c0_226], %434 {strides = array<i32>} : memref<1x8x8x16xf32, #tpu.memory_space<vmem>>, vector<1x1x8x16xf32>,
    return
  }
  func.func @transform_0(%arg0: i32, %arg1: i32, %arg2: memref<9x4xf32, #tpu.memory_space<smem>>, %arg3: memref<4xf32, #tpu.memory_space<smem>>, %arg4: memref<4x8xf32, #tpu.memory_space<smem>>, %arg5: memref<8xf32, #tpu.memory_space<smem>>) -> (i32, i32, i32, i32) {
    %c0_i32 = arith.constant 0 : i32
    %c0_i32_0 = arith.constant 0 : i32
    %c0_i32_1 = arith.constant 0 : i32
    return %arg0, %c0_i32, %arg1, %c0_i32_0 : i32, i32, i32, i32
  }
  func.func @transform_1(%arg0: i32, %arg1: i32, %arg2: memref<9x4xf32, #tpu.memory_space<smem>>, %arg3: memref<4xf32, #tpu.memory_space<smem>>, %arg4: memref<4x8xf32, #tpu.memory_space<smem>>, %arg5: memref<8xf32, #tpu.memory_space<smem>>) -> (i32, i32, i32, i32) {
    %c1_i32 = arith.constant 1 : i32
    %0 = arith.muli %arg1, %c1_i32 : i32
    %c1_i32_0 = arith.constant 1 : i32
    %1 = arith.subi %0, %c1_i32_0 : i32
    %c0_i32 = arith.constant 0 : i32
    %2 = arith.maxsi %1, %c0_i32 : i32
    %c0_i32_1 = arith.constant 0 : i32
    %c0_i32_2 = arith.constant 0 : i32
    %c0_i32_3 = arith.constant 0 : i32
    return %arg0, %c0_i32_1, %2, %c0_i32_2 : i32, i32, i32, i32
  }
  func.func @transform_2(%arg0: i32, %arg1: i32, %arg2: memref<9x4xf32, #tpu.memory_space<smem>>, %arg3: memref<4xf32, #tpu.memory_space<smem>>, %arg4: memref<4x8xf32, #tpu.memory_space<smem>>, %arg5: memref<8xf32, #tpu.memory_space<smem>>) -> (i32, i32, i32, i32) {
    %c1_i32 = arith.constant 1 : i32
    %0 = arith.addi %arg1, %c1_i32 : i32
    %c1_i32_0 = arith.constant 1 : i32
    %1 = arith.muli %0, %c1_i32_0 : i32
    %c1_i32_1 = arith.constant 1 : i32
    %2 = arith.minsi %1, %c1_i32_1 : i32
    %c0_i32 = arith.constant 0 : i32
    %c0_i32_2 = arith.constant 0 : i32
    %c0_i32_3 = arith.constant 0 : i32
    return %arg0, %c0_i32, %2, %c0_i32_2 : i32, i32, i32, i32
  }
  func.func @transform_3(%arg0: i32, %arg1: i32, %arg2: memref<9x4xf32, #tpu.memory_space<smem>>, %arg3: memref<4xf32, #tpu.memory_space<smem>>, %arg4: memref<4x8xf32, #tpu.memory_space<smem>>, %arg5: memref<8xf32, #tpu.memory_space<smem>>) -> (i32, i32, i32, i32) {
    %c0_i32 = arith.constant 0 : i32
    %c0_i32_0 = arith.constant 0 : i32
    %c0_i32_1 = arith.constant 0 : i32
    return %arg0, %c0_i32, %arg1, %c0_i32_0 : i32, i32, i32, i32
  }
}

</mosaic_0001>

<llo_original>
// kernel: tpu_custom_call.1
$region0: #{tpu_custom_call.1}
  #allocation0 [shape = 'u32[]', space=smem, size = 0x4, offset = 0x4, fixed_abs, tag = 'smem constant byte address 0x4 - core index']
  #allocation1 [shape = 'u32[144,128]{1,0:T(1,128)}', space=vmem, size = 0x12000, scoped, tag = 'internal scratch']
  #allocation2 [shape = 's32[1]{0}', space=sflag, size = 0x4, scoped, tag = 'scoped memory for tpu_custom_call.1']
  #allocation3 [shape = 'u8[8192]{0}', space=smem, size = 0x2000, scoped, tag = 'prefetched SMEM operand 0']
  #allocation4 [shape = 'u8[512]{0}', space=smem, size = 0x200, scoped, tag = 'prefetched SMEM operand 1']
  #allocation5 [shape = 'u8[2048]{0}', space=smem, size = 0x800, scoped, tag = 'prefetched SMEM operand 2']
  #allocation6 [shape = 'u8[512]{0}', space=smem, size = 0x200, scoped, tag = 'prefetched SMEM operand 3']
  %s0 = inlined_call_operand.vmem [shape: f32[9,4], index: 0, kind: input, shape index: {}]
  %s1 = inlined_call_operand.vmem [shape: f32[4], index: 1, kind: input, shape index: {}]
  %s2 = inlined_call_operand.vmem [shape: f32[4,8], index: 2, kind: input, shape index: {}]
  %s3 = inlined_call_operand.vmem [shape: f32[8], index: 3, kind: input, shape index: {}]
  %s4 = inlined_call_operand.hbm [shape: f32[2,4,16,16], index: 4, kind: input, shape index: {}]
  %s5 = inlined_call_operand.hbm [shape: f32[2,4,16,16], index: 5, kind: input, shape index: {}]
  %s6 = inlined_call_operand.hbm [shape: f32[2,4,16,16], index: 6, kind: input, shape index: {}]
  %s7 = inlined_call_operand.hbm [shape: f32[2,8,16,16], index: 7, kind: output, shape index: {}]
  %s8 = sld [smem:[#allocation0]]
  $region57: #{tpu_custom_call.1} parent=0
    _
  %s10 = ssub.s32 1, %s8
  %s11 = scalar_select 0, %s10, %s8
  %s12 = sshll.u32 %s0, 4
  %s13 = int_to_ptr.vmem [resolvable:$true] %s12
  %15 = dma.vmem_to_smem %s13, 256, [#allocation3], [#allocation2]
  %s16 = sshll.u32 %s1, 4
  %s17 = int_to_ptr.vmem [resolvable:$true] %s16
  %19 = dma.vmem_to_smem %s17, 16, [#allocation4], [#allocation2]
  %s20 = sshll.u32 %s2, 4
  %s21 = int_to_ptr.vmem [resolvable:$true] %s20
  %23 = dma.vmem_to_smem %s21, 64, [#allocation5], [#allocation2]
  %s24 = sshll.u32 %s3, 4
  %s25 = int_to_ptr.vmem [resolvable:$true] %s24
  %27 = dma.vmem_to_smem %s25, 16, [#allocation6], [#allocation2]
  %28 = dma.done [#allocation2], 352
  %29 = sfence
  $region1: #{tpu_custom_call.1} parent=0
    #allocation7 [shape = 'u8[32768]{0}', space=vmem, size = 0x8000, scoped, tag = 'input window, operand 4']
    #allocation8 [shape = 's32[2]{0}', space=sflag, size = 0x8, scoped, tag = 'scoped memory for tpu_custom_call.1']
    #allocation9 [shape = 's32[2]{0}', space=sflag, size = 0x8, scoped, tag = 'scoped memory for tpu_custom_call.1']
    #allocation10 [shape = 'u8[32768]{0}', space=vmem, size = 0x8000, scoped, tag = 'input window, operand 5']
    #allocation11 [shape = 's32[2]{0}', space=sflag, size = 0x8, scoped, tag = 'scoped memory for tpu_custom_call.1']
    #allocation12 [shape = 'u8[32768]{0}', space=vmem, size = 0x8000, scoped, tag = 'input window, operand 6']
    #allocation13 [shape = 'u8[65536]{0}', space=vmem, size = 0x10000, scoped, tag = 'output window, operand 0']
    %30 = vsyncpa [#allocation8], 0
    %s31 = scalar_lea.sflag [#allocation8], 1
    %32 = vsyncpa %s31, 0
    %33 = vsyncpa [#allocation11], 0
    %s34 = scalar_lea.sflag [#allocation11], 1
    %35 = vsyncpa %s34, 0
    %36 = vsyncpa [#allocation9], 0
    %s37 = scalar_lea.sflag [#allocation9], 1
    %38 = vsyncpa %s37, 0
    loop: start=0, step=1, limit=6
    $region2: #{tpu_custom_call.1} parent=1 // loop_pre_header
      _
    $region3: #{tpu_custom_call.1} parent=1 // loop_header
      %s40 = sphi 0, %s44
      %p41 = scmp.ge.s32.totalorder %s40, 6
      %s47 = sphi 0, %s59
      %s48 = sphi 0, %s55
      %s49 = sphi 0, %s47
      %s50 = sphi 0, %s48
      %s51 = sphi 0, %s49
      %s52 = sphi 0, %s50
      %s64 = sphi 0, %s66
      %s67 = sphi 0, %s64
      %s68 = sphi 0, %s67
      %s84 = sphi 0, %s68
      %s98 = sphi 0, %s100
      %s101 = sphi 0, %s98
      %s102 = sphi 0, %s101
      %s118 = sphi 0, %s102
      %s132 = sphi 0, %s134
      %s135 = sphi 0, %s132
      %s136 = sphi 0, %s135
      %s152 = sphi 0, %s136
      %s160 = sphi 0, %s162
      %s163 = sphi 0, %s160
      %s164 = sphi 0, %s163
      %s180 = sphi 0, %s164
    $region4: #{tpu_custom_call.1} parent=1 // loop_header_branch
      %43 = sbr.rel (%p41) target = $region8
    $region5: #{tpu_custom_call.1} parent=1 // loop_body
      %s45 = ssub.s32 %s40, 1
      %s46 = ssub.s32 %s40, 2
      %s53 = sadd.s32 1, %s48
      %p54 = scmp.ge.s32.totalorder %s53, 2
      %s55 = scalar_select %p54, 0, %s53
      %s56 = sadd.s32 1, %s47
      %s57 = scalar_select %p54, %s56, %s47
      %p58 = scmp.ge.s32.totalorder %s57, 2
      %s59 = scalar_select %p58, 0, %s57
      %s60 = ssub.s32 %s47, %s59
      %s61 = ssub.s32 %s48, %s55
      %s62 = sor.u32 %s60, %s61
      %p63 = scmp.eq.s32.totalorder %s62, 0
      %s65 = sadd.s32 %s64, 1
      %s66 = scalar_select %p63, %s64, %s65
      %p69 = pneg %p63
      %p70 = scmp.eq.s32.totalorder %s40, 3
      %p71 = por %p69, %p70
      %p72 = scmp.ne.s32.totalorder %s64, %s67
      %p73 = scmp.eq.s32.totalorder %s40, 0
      %p74 = por %p72, %p73
      %p75 = scmp.ne.s32.totalorder %s64, %s67
      %p76 = scmp.eq.s32.totalorder %s45, 3
      %p77 = por %p75, %p76
      %p78 = scmp.ne.s32.totalorder %s67, %s68
      %p79 = scmp.eq.s32.totalorder %s45, 0
      %p80 = por %p78, %p79
      %p81 = scmp.ne.s32.totalorder %s67, %s68
      %p82 = scmp.eq.s32.totalorder %s46, 3
      %p83 = por %p81, %p82
      %p85 = scmp.ne.s32.totalorder %s68, %s84
      %p86 = scmp.eq.s32.totalorder %s46, 0
      %p87 = por %p85, %p86
      %s88 = ssub.s32 %s48, 1
      %p89 = scmp.gt.s32.totalorder %s88, 0
      %s90 = scalar_select %p89, %s88, 0
      %s91 = ssub.s32 %s55, 1
      %p92 = scmp.gt.s32.totalorder %s91, 0
      %s93 = scalar_select %p92, %s91, 0
      %s94 = ssub.s32 %s47, %s59
      %s95 = ssub.s32 %s90, %s93
      %s96 = sor.u32 %s94, %s95
      %p97 = scmp.eq.s32.totalorder %s96, 0
      %s99 = sadd.s32 %s98, 1
      %s100 = scalar_select %p97, %s98, %s99
      %p103 = pneg %p97
      %p104 = scmp.eq.s32.totalorder %s40, 3
      %p105 = por %p103, %p104
      %p106 = scmp.ne.s32.totalorder %s98, %s101
      %p107 = scmp.eq.s32.totalorder %s40, 0
      %p108 = por %p106, %p107
      %p109 = scmp.ne.s32.totalorder %s98, %s101
      %p110 = scmp.eq.s32.totalorder %s45, 3
      %p111 = por %p109, %p110
      %p112 = scmp.ne.s32.totalorder %s101, %s102
      %p113 = scmp.eq.s32.totalorder %s45, 0
      %p114 = por %p112, %p113
      %p115 = scmp.ne.s32.totalorder %s101, %s102
      %p116 = scmp.eq.s32.totalorder %s46, 3
      %p117 = por %p115, %p116
      %p119 = scmp.ne.s32.totalorder %s102, %s118
      %p120 = scmp.eq.s32.totalorder %s46, 0
      %p121 = por %p119, %p120
      %s122 = sadd.s32 %s48, 1
      %p123 = scmp.lt.s32.totalorder %s122, 1
      %s124 = scalar_select %p123, %s122, 1
      %s125 = sadd.s32 %s55, 1
      %p126 = scmp.lt.s32.totalorder %s125, 1
      %s127 = scalar_select %p126, %s125, 1
      %s128 = ssub.s32 %s47, %s59
      %s129 = ssub.s32 %s124, %s127
      %s130 = sor.u32 %s128, %s129
      %p131 = scmp.eq.s32.totalorder %s130, 0
      %s133 = sadd.s32 %s132, 1
      %s134 = scalar_select %p131, %s132, %s133
      %p137 = pneg %p131
      %p138 = scmp.eq.s32.totalorder %s40, 3
      %p139 = por %p137, %p138
      %p140 = scmp.ne.s32.totalorder %s132, %s135
      %p141 = scmp.eq.s32.totalorder %s40, 0
      %p142 = por %p140, %p141
      %p143 = scmp.ne.s32.totalorder %s132, %s135
      %p144 = scmp.eq.s32.totalorder %s45, 3
      %p145 = por %p143, %p144
      %p146 = scmp.ne.s32.totalorder %s135, %s136
      %p147 = scmp.eq.s32.totalorder %s45, 0
      %p148 = por %p146, %p147
      %p149 = scmp.ne.s32.totalorder %s135, %s136
      %p150 = scmp.eq.s32.totalorder %s46, 3
      %p151 = por %p149, %p150
      %p153 = scmp.ne.s32.totalorder %s136, %s152
      %p154 = scmp.eq.s32.totalorder %s46, 0
      %p155 = por %p153, %p154
      %s156 = ssub.s32 %s47, %s59
      %s157 = ssub.s32 %s48, %s55
      %s158 = sor.u32 %s156, %s157
      %p159 = scmp.eq.s32.totalorder %s158, 0
      %s161 = sadd.s32 %s160, 1
      %s162 = scalar_select %p159, %s160, %s161
      %p165 = pneg %p159
      %p166 = scmp.eq.s32.totalorder %s40, 3
      %p167 = por %p165, %p166
      %p168 = scmp.ne.s32.totalorder %s160, %s163
      %p169 = scmp.eq.s32.totalorder %s40, 0
      %p170 = por %p168, %p169
      %p171 = scmp.ne.s32.totalorder %s160, %s163
      %p172 = scmp.eq.s32.totalorder %s45, 3
      %p173 = por %p171, %p172
      %p174 = scmp.ne.s32.totalorder %s163, %s164
      %p175 = scmp.eq.s32.totalorder %s45, 0
      %p176 = por %p174, %p175
      %p177 = scmp.ne.s32.totalorder %s163, %s164
      %p178 = scmp.eq.s32.totalorder %s46, 3
      %p179 = por %p177, %p178
      %p181 = scmp.ne.s32.totalorder %s164, %s180
      %p182 = scmp.eq.s32.totalorder %s46, 0
      %p183 = por %p181, %p182
      %p184 = scmp.le.s32.totalorder 1, %s40
      %p185 = scmp.lt.s32.totalorder %s40, 5
      %p186 = pnand %p184, %p185
      %p187 = pneg %p186
      // Predicated region
      $region9: #{tpu_custom_call.1} parent=5 // pred_check
        _
      $region10: #{tpu_custom_call.1} parent=5 // pred_check_branch
        %189 = sbr.rel (%p186) target = $region12
      $region11: #{tpu_custom_call.1} parent=5 // pred_region
        %s190 = ssub.s32 %s40, 1
      $region12: #{tpu_custom_call.1} parent=5 // pred_fallthru
        _
      %p191 = scmp.lt.s32.totalorder %s40, 4
      // Predicated region
      $region13: #{tpu_custom_call.1} parent=5 // pred_check
        %p192 = pneg %p191
      $region14: #{tpu_custom_call.1} parent=5 // pred_check_branch
        %194 = sbr.rel (%p192) target = $region16
      $region15: #{tpu_custom_call.1} parent=5 // pred_region
        // Predicated region
        $region17: #{tpu_custom_call.1} parent=15 // pred_check
          %p195 = pneg %p74
        $region18: #{tpu_custom_call.1} parent=15 // pred_check_branch
          %197 = sbr.rel (%p195) target = $region20
        $region19: #{tpu_custom_call.1} parent=15 // pred_region
          %s198 = sand.u32 %s64, 1
          %s199 = scalar_lea.sflag [#allocation8], %s198
          %s200 = sand.u32 %s64, 1
          %s201 = smul.addr %s200, 32
          %s202 = scalar_lea.vmem [#allocation7], %s201
          %s204 = ssub.s32 512, 512
          %205 = vsyncadd %s199, %s204
          %s206 = smul.addr %s47, 8
          %s207 = sadd.s32 %s48, %s206
          %s208 = smul.addr %s207, 128
          %s209 = scalar_lea.hbm %s4, %s208
          %s210 = sshll.u32 %s202, 4
          %s211 = int_to_ptr.vmem [resolvable:$true] %s210
          %216 = dma.hbm_to_vmem [thread:$0]  %s209, 512, %s211, %s199, 256, 128, 8
        $region20: #{tpu_custom_call.1} parent=15 // pred_fallthru
          _
        // Predicated region
        $region21: #{tpu_custom_call.1} parent=15 // pred_check
          %p217 = pneg %p108
        $region22: #{tpu_custom_call.1} parent=15 // pred_check_branch
          %219 = sbr.rel (%p217) target = $region24
        $region23: #{tpu_custom_call.1} parent=15 // pred_region
          %s220 = sand.u32 %s40, 1
          %s221 = scalar_lea.sflag [#allocation11], %s220
          %s222 = sand.u32 %s98, 1
          %s223 = smul.addr %s222, 32
          %s224 = scalar_lea.vmem [#allocation10], %s223
          %s225 = ssub.s32 %s48, 1
          %p226 = scmp.gt.s32.totalorder %s225, 0
          %s227 = scalar_select %p226, %s225, 0
          %s229 = ssub.s32 512, 512
          %230 = vsyncadd %s221, %s229
          %s231 = smul.addr %s47, 8
          %s232 = sadd.s32 %s227, %s231
          %s233 = smul.addr %s232, 128
          %s234 = scalar_lea.hbm %s5, %s233
          %s235 = sshll.u32 %s224, 4
          %s236 = int_to_ptr.vmem [resolvable:$true] %s235
          %241 = dma.hbm_to_vmem [thread:$0]  %s234, 512, %s236, %s221, 256, 128, 8
        $region24: #{tpu_custom_call.1} parent=15 // pred_fallthru
          _
        // Predicated region
        $region25: #{tpu_custom_call.1} parent=15 // pred_check
          %p242 = pneg %p142
        $region26: #{tpu_custom_call.1} parent=15 // pred_check_branch
          %244 = sbr.rel (%p242) target = $region28
        $region27: #{tpu_custom_call.1} parent=15 // pred_region
          %s245 = sand.u32 %s40, 1
          %s246 = scalar_lea.sflag [#allocation11], %s245
          %s247 = sand.u32 %s132, 1
          %s248 = smul.addr %s247, 32
          %s249 = scalar_lea.vmem [#allocation12], %s248
          %s250 = sadd.s32 %s48, 1
          %p251 = scmp.lt.s32.totalorder %s250, 1
          %s252 = scalar_select %p251, %s250, 1
          %s254 = ssub.s32 512, 512
          %255 = vsyncadd %s246, %s254
          %s256 = smul.addr %s47, 8
          %s257 = sadd.s32 %s252, %s256
          %s258 = smul.addr %s257, 128
          %s259 = scalar_lea.hbm %s6, %s258
          %s260 = sshll.u32 %s249, 4
          %s261 = int_to_ptr.vmem [resolvable:$true] %s260
          %266 = dma.hbm_to_vmem [thread:$0]  %s259, 512, %s261, %s246, 256, 128, 8
        $region28: #{tpu_custom_call.1} parent=15 // pred_fallthru
          _
      $region16: #{tpu_custom_call.1} parent=5 // pred_fallthru
        _
      %p267 = scmp.le.s32.totalorder 1, %s40
      %p268 = scmp.lt.s32.totalorder %s40, 5
      %p269 = pnand %p267, %p268
      %p270 = pneg %p269
      // Predicated region
      $region29: #{tpu_custom_call.1} parent=5 // pred_check
        _
      $region30: #{tpu_custom_call.1} parent=5 // pred_check_branch
        %272 = sbr.rel (%p269) target = $region32
      $region31: #{tpu_custom_call.1} parent=5 // pred_region
        %s273 = ssub.s32 %s40, 1
        %s274 = sand.u32 %s67, 1
        %s275 = scalar_lea.sflag [#allocation8], %s274
        %s276 = sand.u32 %s67, 1
        %s277 = smul.addr %s276, 32
        %s278 = scalar_lea.vmem [#allocation7], %s277
        // Predicated region
        $region33: #{tpu_custom_call.1} parent=31 // pred_check
          %p279 = pneg %p80
        $region34: #{tpu_custom_call.1} parent=31 // pred_check_branch
          %281 = sbr.rel (%p279) target = $region36
        $region35: #{tpu_custom_call.1} parent=31 // pred_region
          %282 = dma.done %s275, 512
        $region36: #{tpu_custom_call.1} parent=31 // pred_fallthru
          _
        %s283 = sand.u32 %s45, 1
        %s284 = scalar_lea.sflag [#allocation11], %s283
        %s285 = sand.u32 %s101, 1
        %s286 = smul.addr %s285, 32
        %s287 = scalar_lea.vmem [#allocation10], %s286
        // Predicated region
        $region37: #{tpu_custom_call.1} parent=31 // pred_check
          %p288 = pneg %p114
        $region38: #{tpu_custom_call.1} parent=31 // pred_check_branch
          %290 = sbr.rel (%p288) target = $region40
        $region39: #{tpu_custom_call.1} parent=31 // pred_region
          %291 = dma.done %s284, 512
        $region40: #{tpu_custom_call.1} parent=31 // pred_fallthru
          _
        %s292 = sand.u32 %s45, 1
        %s293 = scalar_lea.sflag [#allocation11], %s292
        %s294 = sand.u32 %s135, 1
        %s295 = smul.addr %s294, 32
        %s296 = scalar_lea.vmem [#allocation12], %s295
        // Predicated region
        $region41: #{tpu_custom_call.1} parent=31 // pred_check
          %p297 = pneg %p148
        $region42: #{tpu_custom_call.1} parent=31 // pred_check_branch
          %299 = sbr.rel (%p297) target = $region44
        $region43: #{tpu_custom_call.1} parent=31 // pred_region
          %300 = dma.done %s293, 512
        $region44: #{tpu_custom_call.1} parent=31 // pred_fallthru
          _
        %s301 = sand.u32 %s67, 1
        %s302 = scalar_lea.sflag [#allocation8], %s301
        %s303 = sand.u32 %s67, 1
        %s304 = smul.addr %s303, 32
        %s305 = scalar_lea.vmem [#allocation7], %s304
        %p306 = pneg %p80
        %p307 = pneg %p77
        %s308 = sand.u32 %s45, 1
        %s309 = scalar_lea.sflag [#allocation11], %s308
        %s310 = sand.u32 %s101, 1
        %s311 = smul.addr %s310, 32
        %s312 = scalar_lea.vmem [#allocation10], %s311
        %p313 = pneg %p114
        %p314 = pneg %p111
        %s315 = sand.u32 %s45, 1
        %s316 = scalar_lea.sflag [#allocation11], %s315
        %s317 = sand.u32 %s135, 1
        %s318 = smul.addr %s317, 32
        %s319 = scalar_lea.vmem [#allocation12], %s318
        %p320 = pneg %p148
        %p321 = pneg %p145
        %p322 = pneg %p176
        %p323 = pneg %p173
        %s324 = sand.u32 %s163, 1
        %s325 = scalar_lea.sflag [#allocation9], %s324
        %s326 = sand.u32 %s163, 1
        %s327 = smul.addr %s326, 64
        %s328 = scalar_lea.vmem [#allocation13], %s327
        %s329 = ssub.s32 %s50, 1
        %p330 = scmp.gt.s32.totalorder %s329, 0
        %s331 = scalar_select %p330, %s329, 0
        %s332 = sadd.s32 %s50, 1
        %p333 = scmp.lt.s32.totalorder %s332, 1
        %s334 = scalar_select %p333, %s332, 1
        %p335 = scmp.gt.s32.totalorder %s50, 0
        %p336 = scmp.lt.s32.totalorder %s50, 1
        %v337 = vld [vmem:[%s287 + $0x7] sm:$0x1]
        %s338 = scalar_select %p335, 1, 0
        %v339 = vstv %s338
        %vm340 = vcmp.eq.s32.totalorder %v339, 1
        %v341 = vsel %vm340, %v337, 0.0
        %s342 = scalar_lea.vmem %s287, 8 [#allocation10]
        %v343 = vld [vmem:[%s342 + $0x7] sm:$0x1]
        %v344 = vsel %vm340, %v343, 0.0
        %s345 = scalar_lea.vmem %s287, 16 [#allocation10]
        %v346 = vld [vmem:[%s345 + $0x7] sm:$0x1]
        %v347 = vsel %vm340, %v346, 0.0
        %s348 = scalar_lea.vmem %s287, 24 [#allocation10]
        %v349 = vld [vmem:[%s348 + $0x7] sm:$0x1]
        %v350 = vsel %vm340, %v349, 0.0
        %v351 = vld [vmem:[%s296] sm:$0x1]
        %s352 = scalar_select %p336, 1, 0
        %v353 = vstv %s352
        %vm354 = vcmp.eq.s32.totalorder %v353, 1
        %v355 = vsel %vm354, %v351, 0.0
        %s356 = scalar_lea.vmem %s296, 8 [#allocation12]
        %v357 = vld [vmem:[%s356] sm:$0x1]
        %v358 = vsel %vm354, %v357, 0.0
        %s359 = scalar_lea.vmem %s296, 16 [#allocation12]
        %v360 = vld [vmem:[%s359] sm:$0x1]
        %v361 = vsel %vm354, %v360, 0.0
        %s362 = scalar_lea.vmem %s296, 24 [#allocation12]
        %v363 = vld [vmem:[%s362] sm:$0x1]
        %v364 = vsel %vm354, %v363, 0.0
        %s365 = sld [smem:[#allocation6]]
        %v366 = vstv %s365
        %s367 = sld [smem:[#allocation6 + $0x1]]
        %v368 = vstv %s367
        %s369 = sld [smem:[#allocation6 + $0x2]]
        %v370 = vstv %s369
        %s371 = sld [smem:[#allocation6 + $0x3]]
        %v372 = vstv %s371
        %s373 = sld [smem:[#allocation6 + $0x4]]
        %v374 = vstv %s373
        %s375 = sld [smem:[#allocation6 + $0x5]]
        %v376 = vstv %s375
        %s377 = sld [smem:[#allocation6 + $0x6]]
        %v378 = vstv %s377
        %s379 = sld [smem:[#allocation6 + $0x7]]
        %v380 = vstv %s379
        %v381 = vld [vmem:[%s278] sm:$0xff]
        %v383 = vrot.slane %v381, 7
        %vm385 = vcmask 1040384
        %v386 = vsel %vm385, %v341, %v383
        %v387 = vrot.slane %v381, 1
        %v390 = vrot.slane %v355, 1
        %vm392 = vcmask 1046528
        %v393 = vsel %vm392, %v387, %v390
        %s394 = sld [smem:[#allocation4]]
        %v395 = vstv %s394
        %397 = vrot.lane.b32.xlu0 %v386, 1
        %v398 = vpop.permute.xlu0 %397
        %vm400 = vcmask 7168
        %v401 = vsel %vm400, 0.0, %v398
        %s402 = sld [smem:[#allocation3]]
        %v403 = vstv %s402
        %v404 = vmul.f32 %v401, %v403
        %v405 = vadd.f32 %v395, %v404
        %s406 = sld [smem:[#allocation3 + $0x80]]
        %v407 = vstv %s406
        %v408 = vmul.f32 %v386, %v407
        %v409 = vadd.f32 %v405, %v408
        %410 = vrot.lane.b32.xlu0 %v386, 127
        %v411 = vpop.permute.xlu0 %410
        %vm413 = vcmask 121856
        %v414 = vsel %vm413, %v411, 0.0
        %s415 = sld [smem:[#allocation3 + $0x100]]
        %v416 = vstv %s415
        %v417 = vmul.f32 %v414, %v416
        %v418 = vadd.f32 %v409, %v417
        %419 = vrot.lane.b32.xlu0 %v381, 1
        %v420 = vpop.permute.xlu0 %419
        %v422 = vsel %vm400, 0.0, %v420
        %s423 = sld [smem:[#allocation3 + $0x180]]
        %v424 = vstv %s423
        %v425 = vmul.f32 %v422, %v424
        %v426 = vadd.f32 %v418, %v425
        %s427 = sld [smem:[#allocation3 + $0x200]]
        %v428 = vstv %s427
        %v429 = vmul.f32 %v381, %v428
        %v430 = vadd.f32 %v426, %v429
        %431 = vrot.lane.b32.xlu0 %v381, 127
        %v432 = vpop.permute.xlu0 %431
        %v434 = vsel %vm413, %v432, 0.0
        %s435 = sld [smem:[#allocation3 + $0x280]]
        %v436 = vstv %s435
        %v437 = vmul.f32 %v434, %v436
        %v438 = vadd.f32 %v430, %v437
        %440 = vrot.lane.b32.xlu0 %v393, 1
        %v441 = vpop.permute.xlu0 %440
        %v443 = vsel %vm400, 0.0, %v441
        %s444 = sld [smem:[#allocation3 + $0x300]]
        %v445 = vstv %s444
        %v446 = vmul.f32 %v443, %v445
        %v447 = vadd.f32 %v438, %v446
        %s448 = sld [smem:[#allocation3 + $0x380]]
        %v449 = vstv %s448
        %v450 = vmul.f32 %v393, %v449
        %v451 = vadd.f32 %v447, %v450
        %452 = vrot.lane.b32.xlu0 %v393, 127
        %v453 = vpop.permute.xlu0 %452
        %v455 = vsel %vm413, %v453, 0.0
        %s456 = sld [smem:[#allocation3 + $0x400]]
        %v457 = vstv %s456
        %v458 = vmul.f32 %v455, %v457
        %v459 = vadd.f32 %v451, %v458
        %s460 = sld [smem:[#allocation5]]
        %v461 = vstv %s460
        %v462 = vmul.f32 %v459, %v461
        %v463 = vadd.f32 %v366, %v462
        %s464 = sld [smem:[#allocation5 + $0x1]]
        %v465 = vstv %s464
        %v466 = vmul.f32 %v459, %v465
        %v467 = vadd.f32 %v368, %v466
        %s468 = sld [smem:[#allocation5 + $0x2]]
        %v469 = vstv %s468
        %v470 = vmul.f32 %v459, %v469
        %v471 = vadd.f32 %v370, %v470
        %s472 = sld [smem:[#allocation5 + $0x3]]
        %v473 = vstv %s472
        %v474 = vmul.f32 %v459, %v473
        %v475 = vadd.f32 %v372, %v474
        %s476 = sld [smem:[#allocation5 + $0x4]]
        %v477 = vstv %s476
        %v478 = vmul.f32 %v459, %v477
        %v479 = vadd.f32 %v374, %v478
        %s480 = sld [smem:[#allocation5 + $0x5]]
        %v481 = vstv %s480
        %v482 = vmul.f32 %v459, %v481
        %v483 = vadd.f32 %v376, %v482
        %s484 = sld [smem:[#allocation5 + $0x6]]
        %v485 = vstv %s484
        %v486 = vmul.f32 %v459, %v485
        %v487 = vadd.f32 %v378, %v486
        %s488 = sld [smem:[#allocation5 + $0x7]]
        %v489 = vstv %s488
        %v490 = vmul.f32 %v459, %v489
        %v491 = vadd.f32 %v380, %v490
        %s492 = scalar_lea.vmem %s278, 8 [#allocation7]
        %v493 = vld [vmem:[%s492] sm:$0xff]
        %v495 = vrot.slane %v493, 7
        %v497 = vsel %vm385, %v344, %v495
        %v498 = vrot.slane %v493, 1
        %v501 = vrot.slane %v358, 1
        %v503 = vsel %vm392, %v498, %v501
        %s504 = sld [smem:[#allocation4 + $0x1]]
        %v505 = vstv %s504
        %507 = vrot.lane.b32.xlu0 %v497, 1
        %v508 = vpop.permute.xlu0 %507
        %v510 = vsel %vm400, 0.0, %v508
        %s511 = sld [smem:[#allocation3 + $0x1]]
        %v512 = vstv %s511
        %v513 = vmul.f32 %v510, %v512
        %v514 = vadd.f32 %v505, %v513
        %s515 = sld [smem:[#allocation3 + $0x81]]
        %v516 = vstv %s515
        %v517 = vmul.f32 %v497, %v516
        %v518 = vadd.f32 %v514, %v517
        %519 = vrot.lane.b32.xlu0 %v497, 127
        %v520 = vpop.permute.xlu0 %519
        %v522 = vsel %vm413, %v520, 0.0
        %s523 = sld [smem:[#allocation3 + $0x101]]
        %v524 = vstv %s523
        %v525 = vmul.f32 %v522, %v524
        %v526 = vadd.f32 %v518, %v525
        %527 = vrot.lane.b32.xlu0 %v493, 1
        %v528 = vpop.permute.xlu0 %527
        %v530 = vsel %vm400, 0.0, %v528
        %s531 = sld [smem:[#allocation3 + $0x181]]
        %v532 = vstv %s531
        %v533 = vmul.f32 %v530, %v532
        %v534 = vadd.f32 %v526, %v533
        %s535 = sld [smem:[#allocation3 + $0x201]]
        %v536 = vstv %s535
        %v537 = vmul.f32 %v493, %v536
        %v538 = vadd.f32 %v534, %v537
        %539 = vrot.lane.b32.xlu0 %v493, 127
        %v540 = vpop.permute.xlu0 %539
        %v542 = vsel %vm413, %v540, 0.0
        %s543 = sld [smem:[#allocation3 + $0x281]]
        %v544 = vstv %s543
        %v545 = vmul.f32 %v542, %v544
        %v546 = vadd.f32 %v538, %v545
        %548 = vrot.lane.b32.xlu0 %v503, 1
        %v549 = vpop.permute.xlu0 %548
        %v551 = vsel %vm400, 0.0, %v549
        %s552 = sld [smem:[#allocation3 + $0x301]]
        %v553 = vstv %s552
        %v554 = vmul.f32 %v551, %v553
        %v555 = vadd.f32 %v546, %v554
        %s556 = sld [smem:[#allocation3 + $0x381]]
        %v557 = vstv %s556
        %v558 = vmul.f32 %v503, %v557
        %v559 = vadd.f32 %v555, %v558
        %560 = vrot.lane.b32.xlu0 %v503, 127
        %v561 = vpop.permute.xlu0 %560
        %v563 = vsel %vm413, %v561, 0.0
        %s564 = sld [smem:[#allocation3 + $0x401]]
        %v565 = vstv %s564
        %v566 = vmul.f32 %v563, %v565
        %v567 = vadd.f32 %v559, %v566
        %s568 = sld [smem:[#allocation5 + $0x80]]
        %v569 = vstv %s568
        %v570 = vmul.f32 %v567, %v569
        %v571 = vadd.f32 %v463, %v570
        %s572 = sld [smem:[#allocation5 + $0x81]]
        %v573 = vstv %s572
        %v574 = vmul.f32 %v567, %v573
        %v575 = vadd.f32 %v467, %v574
        %s576 = sld [smem:[#allocation5 + $0x82]]
        %v577 = vstv %s576
        %v578 = vmul.f32 %v567, %v577
        %v579 = vadd.f32 %v471, %v578
        %s580 = sld [smem:[#allocation5 + $0x83]]
        %v581 = vstv %s580
        %v582 = vmul.f32 %v567, %v581
        %v583 = vadd.f32 %v475, %v582
        %s584 = sld [smem:[#allocation5 + $0x84]]
        %v585 = vstv %s584
        %v586 = vmul.f32 %v567, %v585
        %v587 = vadd.f32 %v479, %v586
        %s588 = sld [smem:[#allocation5 + $0x85]]
        %v589 = vstv %s588
        %v590 = vmul.f32 %v567, %v589
        %v591 = vadd.f32 %v483, %v590
        %s592 = sld [smem:[#allocation5 + $0x86]]
        %v593 = vstv %s592
        %v594 = vmul.f32 %v567, %v593
        %v595 = vadd.f32 %v487, %v594
        %s596 = sld [smem:[#allocation5 + $0x87]]
        %v597 = vstv %s596
        %v598 = vmul.f32 %v567, %v597
        %v599 = vadd.f32 %v491, %v598
        %s600 = scalar_lea.vmem %s278, 16 [#allocation7]
        %v601 = vld [vmem:[%s600] sm:$0xff]
        %v603 = vrot.slane %v601, 7
        %v605 = vsel %vm385, %v347, %v603
        %v606 = vrot.slane %v601, 1
        %v609 = vrot.slane %v361, 1
        %v611 = vsel %vm392, %v606, %v609
        %s612 = sld [smem:[#allocation4 + $0x2]]
        %v613 = vstv %s612
        %615 = vrot.lane.b32.xlu0 %v605, 1
        %v616 = vpop.permute.xlu0 %615
        %v618 = vsel %vm400, 0.0, %v616
        %s619 = sld [smem:[#allocation3 + $0x2]]
        %v620 = vstv %s619
        %v621 = vmul.f32 %v618, %v620
        %v622 = vadd.f32 %v613, %v621
        %s623 = sld [smem:[#allocation3 + $0x82]]
        %v624 = vstv %s623
        %v625 = vmul.f32 %v605, %v624
        %v626 = vadd.f32 %v622, %v625
        %627 = vrot.lane.b32.xlu0 %v605, 127
        %v628 = vpop.permute.xlu0 %627
        %v630 = vsel %vm413, %v628, 0.0
        %s631 = sld [smem:[#allocation3 + $0x102]]
        %v632 = vstv %s631
        %v633 = vmul.f32 %v630, %v632
        %v634 = vadd.f32 %v626, %v633
        %635 = vrot.lane.b32.xlu0 %v601, 1
        %v636 = vpop.permute.xlu0 %635
        %v638 = vsel %vm400, 0.0, %v636
        %s639 = sld [smem:[#allocation3 + $0x182]]
        %v640 = vstv %s639
        %v641 = vmul.f32 %v638, %v640
        %v642 = vadd.f32 %v634, %v641
        %s643 = sld [smem:[#allocation3 + $0x202]]
        %v644 = vstv %s643
        %v645 = vmul.f32 %v601, %v644
        %v646 = vadd.f32 %v642, %v645
        %647 = vrot.lane.b32.xlu0 %v601, 127
        %v648 = vpop.permute.xlu0 %647
        %v650 = vsel %vm413, %v648, 0.0
        %s651 = sld [smem:[#allocation3 + $0x282]]
        %v652 = vstv %s651
        %v653 = vmul.f32 %v650, %v652
        %v654 = vadd.f32 %v646, %v653
        %656 = vrot.lane.b32.xlu0 %v611, 1
        %v657 = vpop.permute.xlu0 %656
        %v659 = vsel %vm400, 0.0, %v657
        %s660 = sld [smem:[#allocation3 + $0x302]]
        %v661 = vstv %s660
        %v662 = vmul.f32 %v659, %v661
        %v663 = vadd.f32 %v654, %v662
        %s664 = sld [smem:[#allocation3 + $0x382]]
        %v665 = vstv %s664
        %v666 = vmul.f32 %v611, %v665
        %v667 = vadd.f32 %v663, %v666
        %668 = vrot.lane.b32.xlu0 %v611, 127
        %v669 = vpop.permute.xlu0 %668
        %v671 = vsel %vm413, %v669, 0.0
        %s672 = sld [smem:[#allocation3 + $0x402]]
        %v673 = vstv %s672
        %v674 = vmul.f32 %v671, %v673
        %v675 = vadd.f32 %v667, %v674
        %s676 = sld [smem:[#allocation5 + $0x100]]
        %v677 = vstv %s676
        %v678 = vmul.f32 %v675, %v677
        %v679 = vadd.f32 %v571, %v678
        %s680 = sld [smem:[#allocation5 + $0x101]]
        %v681 = vstv %s680
        %v682 = vmul.f32 %v675, %v681
        %v683 = vadd.f32 %v575, %v682
        %s684 = sld [smem:[#allocation5 + $0x102]]
        %v685 = vstv %s684
        %v686 = vmul.f32 %v675, %v685
        %v687 = vadd.f32 %v579, %v686
        %s688 = sld [smem:[#allocation5 + $0x103]]
        %v689 = vstv %s688
        %v690 = vmul.f32 %v675, %v689
        %v691 = vadd.f32 %v583, %v690
        %s692 = sld [smem:[#allocation5 + $0x104]]
        %v693 = vstv %s692
        %v694 = vmul.f32 %v675, %v693
        %v695 = vadd.f32 %v587, %v694
        %s696 = sld [smem:[#allocation5 + $0x105]]
        %v697 = vstv %s696
        %v698 = vmul.f32 %v675, %v697
        %v699 = vadd.f32 %v591, %v698
        %s700 = sld [smem:[#allocation5 + $0x106]]
        %v701 = vstv %s700
        %v702 = vmul.f32 %v675, %v701
        %v703 = vadd.f32 %v595, %v702
        %s704 = sld [smem:[#allocation5 + $0x107]]
        %v705 = vstv %s704
        %v706 = vmul.f32 %v675, %v705
        %v707 = vadd.f32 %v599, %v706
        %s708 = scalar_lea.vmem %s278, 24 [#allocation7]
        %v709 = vld [vmem:[%s708] sm:$0xff]
        %v711 = vrot.slane %v709, 7
        %v713 = vsel %vm385, %v350, %v711
        %v714 = vrot.slane %v709, 1
        %v717 = vrot.slane %v364, 1
        %v719 = vsel %vm392, %v714, %v717
        %s720 = sld [smem:[#allocation4 + $0x3]]
        %v721 = vstv %s720
        %723 = vrot.lane.b32.xlu0 %v713, 1
        %v724 = vpop.permute.xlu0 %723
        %v726 = vsel %vm400, 0.0, %v724
        %s727 = sld [smem:[#allocation3 + $0x3]]
        %v728 = vstv %s727
        %v729 = vmul.f32 %v726, %v728
        %v730 = vadd.f32 %v721, %v729
        %s731 = sld [smem:[#allocation3 + $0x83]]
        %v732 = vstv %s731
        %v733 = vmul.f32 %v713, %v732
        %v734 = vadd.f32 %v730, %v733
        %735 = vrot.lane.b32.xlu0 %v713, 127
        %v736 = vpop.permute.xlu0 %735
        %v738 = vsel %vm413, %v736, 0.0
        %s739 = sld [smem:[#allocation3 + $0x103]]
        %v740 = vstv %s739
        %v741 = vmul.f32 %v738, %v740
        %v742 = vadd.f32 %v734, %v741
        %743 = vrot.lane.b32.xlu0 %v709, 1
        %v744 = vpop.permute.xlu0 %743
        %v746 = vsel %vm400, 0.0, %v744
        %s747 = sld [smem:[#allocation3 + $0x183]]
        %v748 = vstv %s747
        %v749 = vmul.f32 %v746, %v748
        %v750 = vadd.f32 %v742, %v749
        %s751 = sld [smem:[#allocation3 + $0x203]]
        %v752 = vstv %s751
        %v753 = vmul.f32 %v709, %v752
        %v754 = vadd.f32 %v750, %v753
        %755 = vrot.lane.b32.xlu0 %v709, 127
        %v756 = vpop.permute.xlu0 %755
        %v758 = vsel %vm413, %v756, 0.0
        %s759 = sld [smem:[#allocation3 + $0x283]]
        %v760 = vstv %s759
        %v761 = vmul.f32 %v758, %v760
        %v762 = vadd.f32 %v754, %v761
        %764 = vrot.lane.b32.xlu0 %v719, 1
        %v765 = vpop.permute.xlu0 %764
        %v767 = vsel %vm400, 0.0, %v765
        %s768 = sld [smem:[#allocation3 + $0x303]]
        %v769 = vstv %s768
        %v770 = vmul.f32 %v767, %v769
        %v771 = vadd.f32 %v762, %v770
        %s772 = sld [smem:[#allocation3 + $0x383]]
        %v773 = vstv %s772
        %v774 = vmul.f32 %v719, %v773
        %v775 = vadd.f32 %v771, %v774
        %776 = vrot.lane.b32.xlu0 %v719, 127
        %v777 = vpop.permute.xlu0 %776
        %v779 = vsel %vm413, %v777, 0.0
        %s780 = sld [smem:[#allocation3 + $0x403]]
        %v781 = vstv %s780
        %v782 = vmul.f32 %v779, %v781
        %v783 = vadd.f32 %v775, %v782
        %s784 = sld [smem:[#allocation5 + $0x180]]
        %v785 = vstv %s784
        %v786 = vmul.f32 %v783, %v785
        %v787 = vadd.f32 %v679, %v786
        %s788 = sld [smem:[#allocation5 + $0x181]]
        %v789 = vstv %s788
        %v790 = vmul.f32 %v783, %v789
        %v791 = vadd.f32 %v683, %v790
        %s792 = sld [smem:[#allocation5 + $0x182]]
        %v793 = vstv %s792
        %v794 = vmul.f32 %v783, %v793
        %v795 = vadd.f32 %v687, %v794
        %s796 = sld [smem:[#allocation5 + $0x183]]
        %v797 = vstv %s796
        %v798 = vmul.f32 %v783, %v797
        %v799 = vadd.f32 %v691, %v798
        %s800 = sld [smem:[#allocation5 + $0x184]]
        %v801 = vstv %s800
        %v802 = vmul.f32 %v783, %v801
        %v803 = vadd.f32 %v695, %v802
        %s804 = sld [smem:[#allocation5 + $0x185]]
        %v805 = vstv %s804
        %v806 = vmul.f32 %v783, %v805
        %v807 = vadd.f32 %v699, %v806
        %s808 = sld [smem:[#allocation5 + $0x186]]
        %v809 = vstv %s808
        %v810 = vmul.f32 %v783, %v809
        %v811 = vadd.f32 %v703, %v810
        %s812 = sld [smem:[#allocation5 + $0x187]]
        %v813 = vstv %s812
        %v814 = vmul.f32 %v783, %v813
        %v815 = vadd.f32 %v707, %v814
        %vm816 = vcmask 130048
        %817 = vst.msk [vmem:[%s328] sm:$0xff] %vm816, %v787
        %s818 = scalar_lea.vmem %s328, 8 [#allocation13]
        %819 = vst.msk [vmem:[%s818] sm:$0xff] %vm816, %v791
        %s820 = scalar_lea.vmem %s328, 16 [#allocation13]
        %821 = vst.msk [vmem:[%s820] sm:$0xff] %vm816, %v795
        %s822 = scalar_lea.vmem %s328, 24 [#allocation13]
        %823 = vst.msk [vmem:[%s822] sm:$0xff] %vm816, %v799
        %s824 = scalar_lea.vmem %s328, 32 [#allocation13]
        %825 = vst.msk [vmem:[%s824] sm:$0xff] %vm816, %v803
        %s826 = scalar_lea.vmem %s328, 40 [#allocation13]
        %827 = vst.msk [vmem:[%s826] sm:$0xff] %vm816, %v807
        %s828 = scalar_lea.vmem %s328, 48 [#allocation13]
        %829 = vst.msk [vmem:[%s828] sm:$0xff] %vm816, %v811
        %s830 = scalar_lea.vmem %s328, 56 [#allocation13]
        %831 = vst.msk [vmem:[%s830] sm:$0xff] %vm816, %v815
        %s832 = sand.u32 %s163, 1
        %s833 = scalar_lea.sflag [#allocation9], %s832
        %s834 = sand.u32 %s163, 1
        %s835 = smul.addr %s834, 64
        %s836 = scalar_lea.vmem [#allocation13], %s835
        // Predicated region
        $region45: #{tpu_custom_call.1} parent=31 // pred_check
          %p837 = pneg %p173
        $region46: #{tpu_custom_call.1} parent=31 // pred_check_branch
          %839 = sbr.rel (%p837) target = $region48
        $region47: #{tpu_custom_call.1} parent=31 // pred_region
          %s841 = ssub.s32 1024, 1024
          %842 = vsyncadd %s833, %s841
          %s843 = smul.addr %s49, 16
          %s844 = sadd.s32 %s50, %s843
          %s845 = smul.addr %s844, 128
          %s846 = scalar_lea.hbm %s7, %s845
          %s847 = sshll.u32 %s836, 4
          %s848 = int_to_ptr.vmem [resolvable:$true] %s847
          %853 = dma.vmem_to_hbm [thread:$0]  %s848, 1024, %s846, %s833, 128, 256, 8
        $region48: #{tpu_custom_call.1} parent=31 // pred_fallthru
          _
      $region32: #{tpu_custom_call.1} parent=5 // pred_fallthru
        _
      %p854 = scmp.le.s32.totalorder 2, %s40
      // Predicated region
      $region49: #{tpu_custom_call.1} parent=5 // pred_check
        %p855 = pneg %p854
      $region50: #{tpu_custom_call.1} parent=5 // pred_check_branch
        %857 = sbr.rel (%p855) target = $region52
      $region51: #{tpu_custom_call.1} parent=5 // pred_region
        %s858 = ssub.s32 %s40, 2
        // Predicated region
        $region53: #{tpu_custom_call.1} parent=51 // pred_check
          %p859 = pneg %p179
        $region54: #{tpu_custom_call.1} parent=51 // pred_check_branch
          %861 = sbr.rel (%p859) target = $region56
        $region55: #{tpu_custom_call.1} parent=51 // pred_region
          %s862 = sand.u32 %s164, 1
          %s863 = scalar_lea.sflag [#allocation9], %s862
          %s864 = sand.u32 %s164, 1
          %s865 = smul.addr %s864, 64
          %s866 = scalar_lea.vmem [#allocation13], %s865
          %867 = dma.done %s863, 1024
        $region56: #{tpu_custom_call.1} parent=51 // pred_fallthru
          _
      $region52: #{tpu_custom_call.1} parent=5 // pred_fallthru
        _
    $region6: #{tpu_custom_call.1} parent=1 // loop_footer
      %s44 = sadd.s32 1, %s40
    $region7: #{tpu_custom_call.1} parent=1 // loop_footer_branch
      %39 = sbr.rel target = $region3
    $region8: #{tpu_custom_call.1} parent=1 // loop_exit
      _
    %868 = vsyncpa [#allocation8], 1
    %s869 = scalar_lea.sflag [#allocation8], 1
    %870 = vsyncpa %s869, 1
    %871 = vsyncpa [#allocation11], 1
    %s872 = scalar_lea.sflag [#allocation11], 1
    %873 = vsyncpa %s872, 1
    %874 = vsyncpa [#allocation9], 1
    %s875 = scalar_lea.sflag [#allocation9], 1
    %876 = vsyncpa %s875, 1

</llo_original>
